<compile_context>
chip_gen: v7x
topology: tpu7x:2x2x1
jax: 0.10.0
libtpu: 0.0.40
codegen_flags: <defaults>
</compile_context>

<pallas_src>
import math

import jax
import jax.numpy as jnp
from jax.experimental import pallas as pl
from jax.experimental.pallas import tpu as pltpu


# ----------------------------------------------------------------------------
# Kernel 1: im2col + single fused MXU matmul + max-unpool + partial BN stats
# ----------------------------------------------------------------------------
def _inception_kernel(x_ref, idx_ref, w_ref, y_ref, stats_ref, col_ref):
    cin_pad = x_ref.shape[0]
    cout, L = y_ref.shape
    Lx = L + 2                                 # halo of 1 column per side
    K = w_ref.shape[1] // cin_pad              # number of taps (max kernel)

    # --- build im2col stack: col[t*cin_pad + i, l] = x_padded[i, l + t] ------
    xe = x_ref[...]                            # (cin_pad, L + 2*(K//2 + 1))
    for t in range(K):                         # static unroll, aligned stores
        col_ref[pl.ds(t * cin_pad, cin_pad), :] = xe[:, t:t + Lx]

    # --- one MXU matmul: rows [:cout] = bottleneck(concat(Z1,Z2,Z3)),
    #                     rows [cout:] = conv_to_maxpool (Z4), width L+2 ------
    zz = jnp.dot(w_ref[...], col_ref[...], preferred_element_type=jnp.float32)
    acc = zz[:cout, 1:1 + L]                   # bottleneck output, (cout, L)
    z4e = zz[cout:, :]                         # Z4 with 1-col halo, (cout, L+2)

    # --- MaxUnpool1d(kernel=3, stride=1, padding=1) --------------------------
    # indices come from the paired MaxPool1d, so |idx - pos| <= 1: output
    # position o can only receive from sources s in {o-1, o, o+1}.  Visiting
    # d = -1, 0, +1 in order makes the largest source index win on collisions
    # (sequential-scatter semantics).  idx is pre-padded with -1 and Z4 is one
    # column wider, so every shifted view is a static lane-offset slice.
    idxp = idx_ref[...]                        # (cout, L + 2) int32
    pos = jax.lax.broadcasted_iota(jnp.int32, (cout, L), 1)
    mup = jnp.zeros((cout, L), jnp.float32)
    for d in (-1, 0, 1):
        idx_s = idxp[:, 1 + d:1 + d + L]
        z4_s = z4e[:, 1 + d:1 + d + L]
        mup = jnp.where(idx_s == pos, z4_s, mup)

    y = acc + mup                              # BatchNorm input
    y_ref[...] = y

    # --- lane-dense partial BatchNorm statistics -----------------------------
    # per-channel sums folded into 128-wide chunks (final scalar reduction on
    # the host), so the stats output is a full (cout, 128) unmasked store.
    nchunks = L // 128
    s = y[:, 0:128]
    sq = s * s
    for n in range(1, nchunks):
        c = y[:, n * 128:(n + 1) * 128]
        s = s + c
        sq = sq + c * c
    stats_ref[0, :, :] = s
    stats_ref[1, :, :] = sq


def _inception_main(xe, idxp, w_full, L):
    B, cin_pad, Lp = xe.shape
    cout = w_full.shape[0] // 2
    kcin = w_full.shape[1]
    Lx = L + 2

    return pl.pallas_call(
        _inception_kernel,
        out_shape=(jax.ShapeDtypeStruct((B, cout, L), jnp.float32),
                   jax.ShapeDtypeStruct((B, 2, cout, 128), jnp.float32)),
        grid_spec=pltpu.PrefetchScalarGridSpec(
            num_scalar_prefetch=0,
            grid=(B,),
            in_specs=[
                pl.BlockSpec((None, cin_pad, Lp), lambda b: (b, 0, 0)),   # x
                pl.BlockSpec((None, cout, Lx), lambda b: (b, 0, 0)),      # idx
                pl.BlockSpec((2 * cout, kcin), lambda b: (0, 0)),         # W
            ],
            out_specs=(
                pl.BlockSpec((None, cout, L), lambda b: (b, 0, 0)),       # y
                pl.BlockSpec((None, 2, cout, 128), lambda b: (b, 0, 0, 0)),
            ),
            scratch_shapes=[pltpu.VMEM((kcin, Lx), jnp.float32)]),        # im2col
        compiler_params=pltpu.CompilerParams(
            dimension_semantics=("parallel",),
            vmem_limit_bytes=64 * 1024 * 1024),
    )(xe, idxp, w_full)


# ----------------------------------------------------------------------------
# Kernel 2: per-channel affine (folded BatchNorm) + ReLU, in place
# ----------------------------------------------------------------------------
def _bn_relu_kernel(y_ref, scale_ref, shift_ref, o_ref):
    o_ref[...] = jnp.maximum(y_ref[...] * scale_ref[...] + shift_ref[...], 0.0)


def _bn_relu(y, scale, shift):
    B, cout, L = y.shape
    return pl.pallas_call(
        _bn_relu_kernel,
        out_shape=jax.ShapeDtypeStruct((B, cout, L), jnp.float32),
        grid_spec=pltpu.PrefetchScalarGridSpec(
            num_scalar_prefetch=0,
            grid=(B,),
            in_specs=[pl.BlockSpec((None, cout, L), lambda b: (b, 0, 0)),
                      pl.BlockSpec((cout, 1), lambda b: (0, 0)),
                      pl.BlockSpec((cout, 1), lambda b: (0, 0))],
            out_specs=pl.BlockSpec((None, cout, L), lambda b: (b, 0, 0))),
        compiler_params=pltpu.CompilerParams(
            dimension_semantics=("parallel",),
            vmem_limit_bytes=64 * 1024 * 1024),
        input_output_aliases={0: 0},           # normalize y in place
    )(y, scale, shift)


# ----------------------------------------------------------------------------
# Module wrapper
# ----------------------------------------------------------------------------
class InceptionTranspose:
    """JAX/Pallas equivalent of the PyTorch InceptionTranspose module."""

    def __init__(self, in_channels, out_channels, kernel_sizes=(9, 19, 39),
                 bottleneck_channels=32, eps=1e-5, key=None):
        assert all(int(k) % 2 == 1 for k in kernel_sizes), "kernel sizes must be odd"
        self.in_channels = in_channels
        self.out_channels = out_channels
        self.kernel_sizes = tuple(int(k) for k in kernel_sizes)
        self.bottleneck_channels = bottleneck_channels
        self.eps = eps
        if key is None:
            key = jax.random.PRNGKey(0)
        k1, k2, k3 = self.kernel_sizes
        cb = bottleneck_channels
        keys = jax.random.split(key, 5)

        def init(k, shape, fan_in):
            bound = 1.0 / math.sqrt(fan_in)
            return jax.random.uniform(k, shape, jnp.float32, -bound, bound)

        # Raw parameters (PyTorch layouts), kept for the reference path.
        # ConvTranspose1d weight layout: (in_channels, out_channels, k)
        self.w_ct1 = init(keys[0], (in_channels, cb, k1), cb * k1)
        self.w_ct2 = init(keys[1], (in_channels, cb, k2), cb * k2)
        self.w_ct3 = init(keys[2], (in_channels, cb, k3), cb * k3)
        # Conv1d(in, out, kernel=1) weight (squeezed): (out_channels, in_channels)
        self.w4 = init(keys[3], (out_channels, in_channels), in_channels)
        # bottleneck Conv1d(3*cb, out, kernel=1) weight (squeezed): (out, 3*cb)
        self.wb = init(keys[4], (out_channels, 3 * cb), 3 * cb)
        # BatchNorm1d affine params of a freshly constructed module
        self.gamma = jnp.ones((out_channels,), jnp.float32)
        self.beta = jnp.zeros((out_channels,), jnp.float32)

        # --- host-side algebraic fold (done once): --------------------------
        # combined per-tap weight Wc[t] = sum_b wb_b @ flip(w_ct_b)[..., tap],
        # smaller branches centered inside K = max(kernel_sizes) taps; w4 is
        # appended as extra output rows on the center tap so Z4 comes out of
        # the same matmul.  Stored lane-dense as (2*cout, K*cin_pad).
        K = max(self.kernel_sizes)
        P = K // 2
        cin_pad = ((in_channels + 7) // 8) * 8
        wb_splits = (self.wb[:, :cb], self.wb[:, cb:2 * cb], self.wb[:, 2 * cb:])
        Wc = jnp.zeros((K, out_channels, in_channels), jnp.float32)
        for w_ct, wb_b in zip((self.w_ct1, self.w_ct2, self.w_ct3), wb_splits):
            k_b = w_ct.shape[-1]
            p_b = k_b // 2
            # contrib[t, o, i] = sum_m wb_b[o, m] * w_ct[i, m, k_b - 1 - t]
            contrib = jnp.einsum('om,imj->joi', wb_b, jnp.flip(w_ct, axis=-1))
            Wc = Wc.at[P - p_b:P - p_b + k_b].add(contrib)
        Wc_pad = jnp.zeros((K, out_channels, cin_pad), jnp.float32)
        Wc_pad = Wc_pad.at[:, :, :in_channels].set(Wc)
        top = jnp.transpose(Wc_pad, (1, 0, 2)).reshape(out_channels, K * cin_pad)
        w4_taps = jnp.zeros((K, out_channels, cin_pad), jnp.float32)
        w4_taps = w4_taps.at[P, :, :in_channels].set(self.w4)
        bot = jnp.transpose(w4_taps, (1, 0, 2)).reshape(out_channels, K * cin_pad)
        self.w_full = jnp.concatenate([top, bot], axis=0)   # (2*cout, K*cin_pad)
        self.K = K
        self.Pe = P + 1              # extra +1 so Z4 gets a 1-column halo
        self.cin_pad = cin_pad

    def __call__(self, x, indices):
        B, cin, L = x.shape
        assert cin == self.in_channels
        # TODO(synk): general L would need a ragged/padded stats path.
        assert L % 128 == 0, "sequence length must be a multiple of 128"
        x = x.astype(jnp.float32)
        idx = indices.astype(jnp.int32)

        # Pad channels to a sublane tile (8) and length by K//2 + 1 per side so
        # every im2col tap (and the Z4 halo column) is an in-range static slice
        # inside the kernel.  idx gets one -1 column per side so the +/-1
        # shifted unpool views are plain static slices too.
        xe = jnp.pad(x, ((0, 0), (0, self.cin_pad - cin), (self.Pe, self.Pe)))
        idxp = jnp.pad(idx, ((0, 0), (0, 0), (1, 1)), constant_values=-1)

        y, stats = _inception_main(xe, idxp, self.w_full, L)

        # Training-mode BatchNorm1d: per-channel batch statistics (biased var),
        # reduced from the lane-dense per-batch partial sums of kernel 1.
        n = float(B * L)
        total = jnp.sum(stats[:, 0], axis=(0, 2))
        totsq = jnp.sum(stats[:, 1], axis=(0, 2))
        mean = total / n
        var = jnp.maximum(totsq / n - mean * mean, 0.0)
        scale = self.gamma / jnp.sqrt(var + self.eps)
        shift = self.beta - mean * scale
        return _bn_relu(y, scale[:, None], shift[:, None])


# ----------------------------------------------------------------------------
# Pure-JAX reference (independent formulation) for correctness checking
# ----------------------------------------------------------------------------
def _reference_forward(mod, x, indices):
    B, cin, L = x.shape
    indices = indices.astype(jnp.int32)

    def conv_transpose_same(x, w_ct):            # direct ConvTranspose1d def.
        k = w_ct.shape[-1]
        p = k // 2
        xpd = jnp.pad(x, ((0, 0), (0, 0), (p, p)))
        out = jnp.zeros((B, w_ct.shape[1], L), jnp.float32)
        for j in range(k):
            out = out + jnp.einsum('cm,bct->bmt', w_ct[:, :, j],
                                   xpd[:, :, 2 * p - j: 2 * p - j + L])
        return out

    z1 = conv_transpose_same(x, mod.w_ct1)
    z2 = conv_transpose_same(x, mod.w_ct2)
    z3 = conv_transpose_same(x, mod.w_ct3)
    z4 = jnp.einsum('oc,bcl->bol', mod.w4, x)
    bn_in = jnp.einsum('om,bml->bol', mod.wb, jnp.concatenate([z1, z2, z3], axis=1))

    # General MaxUnpool1d: last-write-wins scatter over increasing source pos.
    l_src = jnp.arange(L)[None, None, :, None]
    match = indices[..., :, None] == jnp.arange(L)[None, None, None, :]
    best = jnp.max(jnp.where(match, l_src, -1), axis=2)
    mup = jnp.where(best >= 0,
                    jnp.take_along_axis(z4, jnp.maximum(best, 0), axis=2),
                    0.0)

    pre = bn_in + mup
    mean = pre.mean(axis=(0, 2), keepdims=True)
    var = ((pre - mean) ** 2).mean(axis=(0, 2), keepdims=True)
    norm = (pre - mean) / jnp.sqrt(var + mod.eps)
    out = norm * mod.gamma[None, :, None] + mod.beta[None, :, None]
    return jnp.maximum(out, 0.0)


if __name__ == "__main__":
    key = jax.random.PRNGKey(0)
    B, C_IN, C_OUT, L = 2, 4, 8, 256
    kx, ki, kw = jax.random.split(key, 3)

    x = jax.random.normal(kx, (B, C_IN, L), dtype=jnp.float32)

    # Build indices exactly as MaxPool1d(kernel=3, stride=1, padding=1,
    # return_indices=True) would: argmax over each +/-1 window of a signal.
    sig = jax.random.normal(ki, (B, C_OUT, L), dtype=jnp.float32)
    neg = jnp.full((B, C_OUT, 1), -1e30, jnp.float32)
    left = jnp.concatenate([neg, sig[:, :, :-1]], axis=-1)
    right = jnp.concatenate([sig[:, :, 1:], neg], axis=-1)
    arg = jnp.argmax(jnp.stack([left, sig, right], axis=-1), axis=-1)
    pos = jnp.arange(L, dtype=jnp.int32)[None, None, :]
    indices = jnp.clip(pos + arg.astype(jnp.int32) - 1, 0, L - 1)

    mod = InceptionTranspose(C_IN, C_OUT, kernel_sizes=(9, 19, 39),
                             bottleneck_channels=32, key=kw)
    out = mod(x, indices)
    out = jax.block_until_ready(out)

    ref = _reference_forward(mod, x, indices)
    assert out.shape == (B, C_OUT, L), out.shape
    assert out.dtype == jnp.float32
    max_err = float(jnp.max(jnp.abs(out - ref)))
    assert jnp.allclose(out, ref, rtol=1e-4, atol=2e-4), max_err

    print("KERNEL_OK")
</pallas_src>

<mosaic_0001>
module attributes {stable_mosaic.version = 11 : i64} {
  func.func @_inception_kernel(%arg0: i32, %arg1: memref<1x8x296xf32, #tpu.memory_space<vmem>>, %arg2: memref<1x8x258xi32, #tpu.memory_space<vmem>>, %arg3: memref<16x312xf32, #tpu.memory_space<vmem>>, %arg4: memref<1x8x256xf32, #tpu.memory_space<vmem>>, %arg5: memref<1x2x8x128xf32, #tpu.memory_space<vmem>>, %arg6: memref<312x258xf32, #tpu.memory_space<vmem>>) attributes {dimension_semantics = [#tpu.dimension_semantics<parallel>], iteration_bounds = array<i64: 2>, scalar_prefetch = 0 : i64, scratch_operands = 1 : i64, tpu.core_type = #tpu.core_type<tc>, window_params = [{transform_indices = @transform_0, window_bounds = array<i64: 1, 8, 296>}, {transform_indices = @transform_1, window_bounds = array<i64: 1, 8, 258>}, {pipeline_mode = #tpu.pipeline_mode<synchronous>, transform_indices = @transform_2, window_bounds = array<i64: 16, 312>}, {transform_indices = @transform_3, window_bounds = array<i64: 1, 8, 256>}, {transform_indices = @transform_4, window_bounds = array<i64: 1, 2, 8, 128>}]} {
    %c0 = arith.constant 0 : index
    %c0_0 = arith.constant 0 : index
    %c0_1 = arith.constant 0 : index
    %0 = vector.load %arg1[%c0, %c0_0, %c0_1] : memref<1x8x296xf32, #tpu.memory_space<vmem>>, vector<1x8x296xf32>
    %1 = vector.shape_cast %0 : vector<1x8x296xf32> to vector<8x296xf32>
    %2 = vector.extract_strided_slice %1 {offsets = [0, 0], sizes = [8, 258], strides = [1, 1]} : vector<8x296xf32> to vector<8x258xf32>
    %c0_2 = arith.constant 0 : index
    %c0_3 = arith.constant 0 : index
    %3 = vector.load %arg6[%c0_2, %c0_3] : memref<312x258xf32, #tpu.memory_space<vmem>>, vector<8x258xf32>
    tpu.vector_store %arg6[%c0_2, %c0_3], %2 {strides = array<i32>} : memref<312x258xf32, #tpu.memory_space<vmem>>, vector<8x258xf32>,
    %4 = vector.extract_strided_slice %1 {offsets = [0, 1], sizes = [8, 258], strides = [1, 1]} : vector<8x296xf32> to vector<8x258xf32>
    %c8 = arith.constant 8 : index
    %c0_4 = arith.constant 0 : index
    %5 = vector.load %arg6[%c8, %c0_4] : memref<312x258xf32, #tpu.memory_space<vmem>>, vector<8x258xf32>
    tpu.vector_store %arg6[%c8, %c0_4], %4 {strides = array<i32>} : memref<312x258xf32, #tpu.memory_space<vmem>>, vector<8x258xf32>,
    %6 = vector.extract_strided_slice %1 {offsets = [0, 2], sizes = [8, 258], strides = [1, 1]} : vector<8x296xf32> to vector<8x258xf32>
    %c16 = arith.constant 16 : index
    %c0_5 = arith.constant 0 : index
    %7 = vector.load %arg6[%c16, %c0_5] : memref<312x258xf32, #tpu.memory_space<vmem>>, vector<8x258xf32>
    tpu.vector_store %arg6[%c16, %c0_5], %6 {strides = array<i32>} : memref<312x258xf32, #tpu.memory_space<vmem>>, vector<8x258xf32>,
    %8 = vector.extract_strided_slice %1 {offsets = [0, 3], sizes = [8, 258], strides = [1, 1]} : vector<8x296xf32> to vector<8x258xf32>
    %c24 = arith.constant 24 : index
    %c0_6 = arith.constant 0 : index
    %9 = vector.load %arg6[%c24, %c0_6] : memref<312x258xf32, #tpu.memory_space<vmem>>, vector<8x258xf32>
    tpu.vector_store %arg6[%c24, %c0_6], %8 {strides = array<i32>} : memref<312x258xf32, #tpu.memory_space<vmem>>, vector<8x258xf32>,
    %10 = vector.extract_strided_slice %1 {offsets = [0, 4], sizes = [8, 258], strides = [1, 1]} : vector<8x296xf32> to vector<8x258xf32>
    %c32 = arith.constant 32 : index
    %c0_7 = arith.constant 0 : index
    %11 = vector.load %arg6[%c32, %c0_7] : memref<312x258xf32, #tpu.memory_space<vmem>>, vector<8x258xf32>
    tpu.vector_store %arg6[%c32, %c0_7], %10 {strides = array<i32>} : memref<312x258xf32, #tpu.memory_space<vmem>>, vector<8x258xf32>,
    %12 = vector.extract_strided_slice %1 {offsets = [0, 5], sizes = [8, 258], strides = [1, 1]} : vector<8x296xf32> to vector<8x258xf32>
    %c40 = arith.constant 40 : index
    %c0_8 = arith.constant 0 : index
    %13 = vector.load %arg6[%c40, %c0_8] : memref<312x258xf32, #tpu.memory_space<vmem>>, vector<8x258xf32>
    tpu.vector_store %arg6[%c40, %c0_8], %12 {strides = array<i32>} : memref<312x258xf32, #tpu.memory_space<vmem>>, vector<8x258xf32>,
    %14 = vector.extract_strided_slice %1 {offsets = [0, 6], sizes = [8, 258], strides = [1, 1]} : vector<8x296xf32> to vector<8x258xf32>
    %c48 = arith.constant 48 : index
    %c0_9 = arith.constant 0 : index
    %15 = vector.load %arg6[%c48, %c0_9] : memref<312x258xf32, #tpu.memory_space<vmem>>, vector<8x258xf32>
    tpu.vector_store %arg6[%c48, %c0_9], %14 {strides = array<i32>} : memref<312x258xf32, #tpu.memory_space<vmem>>, vector<8x258xf32>,
    %16 = vector.extract_strided_slice %1 {offsets = [0, 7], sizes = [8, 258], strides = [1, 1]} : vector<8x296xf32> to vector<8x258xf32>
    %c56 = arith.constant 56 : index
    %c0_10 = arith.constant 0 : index
    %17 = vector.load %arg6[%c56, %c0_10] : memref<312x258xf32, #tpu.memory_space<vmem>>, vector<8x258xf32>
    tpu.vector_store %arg6[%c56, %c0_10], %16 {strides = array<i32>} : memref<312x258xf32, #tpu.memory_space<vmem>>, vector<8x258xf32>,
    %18 = vector.extract_strided_slice %1 {offsets = [0, 8], sizes = [8, 258], strides = [1, 1]} : vector<8x296xf32> to vector<8x258xf32>
    %c64 = arith.constant 64 : index
    %c0_11 = arith.constant 0 : index
    %19 = vector.load %arg6[%c64, %c0_11] : memref<312x258xf32, #tpu.memory_space<vmem>>, vector<8x258xf32>
    tpu.vector_store %arg6[%c64, %c0_11], %18 {strides = array<i32>} : memref<312x258xf32, #tpu.memory_space<vmem>>, vector<8x258xf32>,
    %20 = vector.extract_strided_slice %1 {offsets = [0, 9], sizes = [8, 258], strides = [1, 1]} : vector<8x296xf32> to vector<8x258xf32>
    %c72 = arith.constant 72 : index
    %c0_12 = arith.constant 0 : index
    %21 = vector.load %arg6[%c72, %c0_12] : memref<312x258xf32, #tpu.memory_space<vmem>>, vector<8x258xf32>
    tpu.vector_store %arg6[%c72, %c0_12], %20 {strides = array<i32>} : memref<312x258xf32, #tpu.memory_space<vmem>>, vector<8x258xf32>,
    %22 = vector.extract_strided_slice %1 {offsets = [0, 10], sizes = [8, 258], strides = [1, 1]} : vector<8x296xf32> to vector<8x258xf32>
    %c80 = arith.constant 80 : index
    %c0_13 = arith.constant 0 : index
    %23 = vector.load %arg6[%c80, %c0_13] : memref<312x258xf32, #tpu.memory_space<vmem>>, vector<8x258xf32>
    tpu.vector_store %arg6[%c80, %c0_13], %22 {strides = array<i32>} : memref<312x258xf32, #tpu.memory_space<vmem>>, vector<8x258xf32>,
    %24 = vector.extract_strided_slice %1 {offsets = [0, 11], sizes = [8, 258], strides = [1, 1]} : vector<8x296xf32> to vector<8x258xf32>
    %c88 = arith.constant 88 : index
    %c0_14 = arith.constant 0 : index
    %25 = vector.load %arg6[%c88, %c0_14] : memref<312x258xf32, #tpu.memory_space<vmem>>, vector<8x258xf32>
    tpu.vector_store %arg6[%c88, %c0_14], %24 {strides = array<i32>} : memref<312x258xf32, #tpu.memory_space<vmem>>, vector<8x258xf32>,
    %26 = vector.extract_strided_slice %1 {offsets = [0, 12], sizes = [8, 258], strides = [1, 1]} : vector<8x296xf32> to vector<8x258xf32>
    %c96 = arith.constant 96 : index
    %c0_15 = arith.constant 0 : index
    %27 = vector.load %arg6[%c96, %c0_15] : memref<312x258xf32, #tpu.memory_space<vmem>>, vector<8x258xf32>
    tpu.vector_store %arg6[%c96, %c0_15], %26 {strides = array<i32>} : memref<312x258xf32, #tpu.memory_space<vmem>>, vector<8x258xf32>,
    %28 = vector.extract_strided_slice %1 {offsets = [0, 13], sizes = [8, 258], strides = [1, 1]} : vector<8x296xf32> to vector<8x258xf32>
    %c104 = arith.constant 104 : index
    %c0_16 = arith.constant 0 : index
    %29 = vector.load %arg6[%c104, %c0_16] : memref<312x258xf32, #tpu.memory_space<vmem>>, vector<8x258xf32>
    tpu.vector_store %arg6[%c104, %c0_16], %28 {strides = array<i32>} : memref<312x258xf32, #tpu.memory_space<vmem>>, vector<8x258xf32>,
    %30 = vector.extract_strided_slice %1 {offsets = [0, 14], sizes = [8, 258], strides = [1, 1]} : vector<8x296xf32> to vector<8x258xf32>
    %c112 = arith.constant 112 : index
    %c0_17 = arith.constant 0 : index
    %31 = vector.load %arg6[%c112, %c0_17] : memref<312x258xf32, #tpu.memory_space<vmem>>, vector<8x258xf32>
    tpu.vector_store %arg6[%c112, %c0_17], %30 {strides = array<i32>} : memref<312x258xf32, #tpu.memory_space<vmem>>, vector<8x258xf32>,
    %32 = vector.extract_strided_slice %1 {offsets = [0, 15], sizes = [8, 258], strides = [1, 1]} : vector<8x296xf32> to vector<8x258xf32>
    %c120 = arith.constant 120 : index
    %c0_18 = arith.constant 0 : index
    %33 = vector.load %arg6[%c120, %c0_18] : memref<312x258xf32, #tpu.memory_space<vmem>>, vector<8x258xf32>
    tpu.vector_store %arg6[%c120, %c0_18], %32 {strides = array<i32>} : memref<312x258xf32, #tpu.memory_space<vmem>>, vector<8x258xf32>,
    %34 = vector.extract_strided_slice %1 {offsets = [0, 16], sizes = [8, 258], strides = [1, 1]} : vector<8x296xf32> to vector<8x258xf32>
    %c128 = arith.constant 128 : index
    %c0_19 = arith.constant 0 : index
    %35 = vector.load %arg6[%c128, %c0_19] : memref<312x258xf32, #tpu.memory_space<vmem>>, vector<8x258xf32>
    tpu.vector_store %arg6[%c128, %c0_19], %34 {strides = array<i32>} : memref<312x258xf32, #tpu.memory_space<vmem>>, vector<8x258xf32>,
    %36 = vector.extract_strided_slice %1 {offsets = [0, 17], sizes = [8, 258], strides = [1, 1]} : vector<8x296xf32> to vector<8x258xf32>
    %c136 = arith.constant 136 : index
    %c0_20 = arith.constant 0 : index
    %37 = vector.load %arg6[%c136, %c0_20] : memref<312x258xf32, #tpu.memory_space<vmem>>, vector<8x258xf32>
    tpu.vector_store %arg6[%c136, %c0_20], %36 {strides = array<i32>} : memref<312x258xf32, #tpu.memory_space<vmem>>, vector<8x258xf32>,
    %38 = vector.extract_strided_slice %1 {offsets = [0, 18], sizes = [8, 258], strides = [1, 1]} : vector<8x296xf32> to vector<8x258xf32>
    %c144 = arith.constant 144 : index
    %c0_21 = arith.constant 0 : index
    %39 = vector.load %arg6[%c144, %c0_21] : memref<312x258xf32, #tpu.memory_space<vmem>>, vector<8x258xf32>
    tpu.vector_store %arg6[%c144, %c0_21], %38 {strides = array<i32>} : memref<312x258xf32, #tpu.memory_space<vmem>>, vector<8x258xf32>,
    %40 = vector.extract_strided_slice %1 {offsets = [0, 19], sizes = [8, 258], strides = [1, 1]} : vector<8x296xf32> to vector<8x258xf32>
    %c152 = arith.constant 152 : index
    %c0_22 = arith.constant 0 : index
    %41 = vector.load %arg6[%c152, %c0_22] : memref<312x258xf32, #tpu.memory_space<vmem>>, vector<8x258xf32>
    tpu.vector_store %arg6[%c152, %c0_22], %40 {strides = array<i32>} : memref<312x258xf32, #tpu.memory_space<vmem>>, vector<8x258xf32>,
    %42 = vector.extract_strided_slice %1 {offsets = [0, 20], sizes = [8, 258], strides = [1, 1]} : vector<8x296xf32> to vector<8x258xf32>
    %c160 = arith.constant 160 : index
    %c0_23 = arith.constant 0 : index
    %43 = vector.load %arg6[%c160, %c0_23] : memref<312x258xf32, #tpu.memory_space<vmem>>, vector<8x258xf32>
    tpu.vector_store %arg6[%c160, %c0_23], %42 {strides = array<i32>} : memref<312x258xf32, #tpu.memory_space<vmem>>, vector<8x258xf32>,
    %44 = vector.extract_strided_slice %1 {offsets = [0, 21], sizes = [8, 258], strides = [1, 1]} : vector<8x296xf32> to vector<8x258xf32>
    %c168 = arith.constant 168 : index
    %c0_24 = arith.constant 0 : index
    %45 = vector.load %arg6[%c168, %c0_24] : memref<312x258xf32, #tpu.memory_space<vmem>>, vector<8x258xf32>
    tpu.vector_store %arg6[%c168, %c0_24], %44 {strides = array<i32>} : memref<312x258xf32, #tpu.memory_space<vmem>>, vector<8x258xf32>,
    %46 = vector.extract_strided_slice %1 {offsets = [0, 22], sizes = [8, 258], strides = [1, 1]} : vector<8x296xf32> to vector<8x258xf32>
    %c176 = arith.constant 176 : index
    %c0_25 = arith.constant 0 : index
    %47 = vector.load %arg6[%c176, %c0_25] : memref<312x258xf32, #tpu.memory_space<vmem>>, vector<8x258xf32>
    tpu.vector_store %arg6[%c176, %c0_25], %46 {strides = array<i32>} : memref<312x258xf32, #tpu.memory_space<vmem>>, vector<8x258xf32>,
    %48 = vector.extract_strided_slice %1 {offsets = [0, 23], sizes = [8, 258], strides = [1, 1]} : vector<8x296xf32> to vector<8x258xf32>
    %c184 = arith.constant 184 : index
    %c0_26 = arith.constant 0 : index
    %49 = vector.load %arg6[%c184, %c0_26] : memref<312x258xf32, #tpu.memory_space<vmem>>, vector<8x258xf32>
    tpu.vector_store %arg6[%c184, %c0_26], %48 {strides = array<i32>} : memref<312x258xf32, #tpu.memory_space<vmem>>, vector<8x258xf32>,
    %50 = vector.extract_strided_slice %1 {offsets = [0, 24], sizes = [8, 258], strides = [1, 1]} : vector<8x296xf32> to vector<8x258xf32>
    %c192 = arith.constant 192 : index
    %c0_27 = arith.constant 0 : index
    %51 = vector.load %arg6[%c192, %c0_27] : memref<312x258xf32, #tpu.memory_space<vmem>>, vector<8x258xf32>
    tpu.vector_store %arg6[%c192, %c0_27], %50 {strides = array<i32>} : memref<312x258xf32, #tpu.memory_space<vmem>>, vector<8x258xf32>,
    %52 = vector.extract_strided_slice %1 {offsets = [0, 25], sizes = [8, 258], strides = [1, 1]} : vector<8x296xf32> to vector<8x258xf32>
    %c200 = arith.constant 200 : index
    %c0_28 = arith.constant 0 : index
    %53 = vector.load %arg6[%c200, %c0_28] : memref<312x258xf32, #tpu.memory_space<vmem>>, vector<8x258xf32>
    tpu.vector_store %arg6[%c200, %c0_28], %52 {strides = array<i32>} : memref<312x258xf32, #tpu.memory_space<vmem>>, vector<8x258xf32>,
    %54 = vector.extract_strided_slice %1 {offsets = [0, 26], sizes = [8, 258], strides = [1, 1]} : vector<8x296xf32> to vector<8x258xf32>
    %c208 = arith.constant 208 : index
    %c0_29 = arith.constant 0 : index
    %55 = vector.load %arg6[%c208, %c0_29] : memref<312x258xf32, #tpu.memory_space<vmem>>, vector<8x258xf32>
    tpu.vector_store %arg6[%c208, %c0_29], %54 {strides = array<i32>} : memref<312x258xf32, #tpu.memory_space<vmem>>, vector<8x258xf32>,
    %56 = vector.extract_strided_slice %1 {offsets = [0, 27], sizes = [8, 258], strides = [1, 1]} : vector<8x296xf32> to vector<8x258xf32>
    %c216 = arith.constant 216 : index
    %c0_30 = arith.constant 0 : index
    %57 = vector.load %arg6[%c216, %c0_30] : memref<312x258xf32, #tpu.memory_space<vmem>>, vector<8x258xf32>
    tpu.vector_store %arg6[%c216, %c0_30], %56 {strides = array<i32>} : memref<312x258xf32, #tpu.memory_space<vmem>>, vector<8x258xf32>,
    %58 = vector.extract_strided_slice %1 {offsets = [0, 28], sizes = [8, 258], strides = [1, 1]} : vector<8x296xf32> to vector<8x258xf32>
    %c224 = arith.constant 224 : index
    %c0_31 = arith.constant 0 : index
    %59 = vector.load %arg6[%c224, %c0_31] : memref<312x258xf32, #tpu.memory_space<vmem>>, vector<8x258xf32>
    tpu.vector_store %arg6[%c224, %c0_31], %58 {strides = array<i32>} : memref<312x258xf32, #tpu.memory_space<vmem>>, vector<8x258xf32>,
    %60 = vector.extract_strided_slice %1 {offsets = [0, 29], sizes = [8, 258], strides = [1, 1]} : vector<8x296xf32> to vector<8x258xf32>
    %c232 = arith.constant 232 : index
    %c0_32 = arith.constant 0 : index
    %61 = vector.load %arg6[%c232, %c0_32] : memref<312x258xf32, #tpu.memory_space<vmem>>, vector<8x258xf32>
    tpu.vector_store %arg6[%c232, %c0_32], %60 {strides = array<i32>} : memref<312x258xf32, #tpu.memory_space<vmem>>, vector<8x258xf32>,
    %62 = vector.extract_strided_slice %1 {offsets = [0, 30], sizes = [8, 258], strides = [1, 1]} : vector<8x296xf32> to vector<8x258xf32>
    %c240 = arith.constant 240 : index
    %c0_33 = arith.constant 0 : index
    %63 = vector.load %arg6[%c240, %c0_33] : memref<312x258xf32, #tpu.memory_space<vmem>>, vector<8x258xf32>
    tpu.vector_store %arg6[%c240, %c0_33], %62 {strides = array<i32>} : memref<312x258xf32, #tpu.memory_space<vmem>>, vector<8x258xf32>,
    %64 = vector.extract_strided_slice %1 {offsets = [0, 31], sizes = [8, 258], strides = [1, 1]} : vector<8x296xf32> to vector<8x258xf32>
    %c248 = arith.constant 248 : index
    %c0_34 = arith.constant 0 : index
    %65 = vector.load %arg6[%c248, %c0_34] : memref<312x258xf32, #tpu.memory_space<vmem>>, vector<8x258xf32>
    tpu.vector_store %arg6[%c248, %c0_34], %64 {strides = array<i32>} : memref<312x258xf32, #tpu.memory_space<vmem>>, vector<8x258xf32>,
    %66 = vector.extract_strided_slice %1 {offsets = [0, 32], sizes = [8, 258], strides = [1, 1]} : vector<8x296xf32> to vector<8x258xf32>
    %c256 = arith.constant 256 : index
    %c0_35 = arith.constant 0 : index
    %67 = vector.load %arg6[%c256, %c0_35] : memref<312x258xf32, #tpu.memory_space<vmem>>, vector<8x258xf32>
    tpu.vector_store %arg6[%c256, %c0_35], %66 {strides = array<i32>} : memref<312x258xf32, #tpu.memory_space<vmem>>, vector<8x258xf32>,
    %68 = vector.extract_strided_slice %1 {offsets = [0, 33], sizes = [8, 258], strides = [1, 1]} : vector<8x296xf32> to vector<8x258xf32>
    %c264 = arith.constant 264 : index
    %c0_36 = arith.constant 0 : index
    %69 = vector.load %arg6[%c264, %c0_36] : memref<312x258xf32, #tpu.memory_space<vmem>>, vector<8x258xf32>
    tpu.vector_store %arg6[%c264, %c0_36], %68 {strides = array<i32>} : memref<312x258xf32, #tpu.memory_space<vmem>>, vector<8x258xf32>,
    %70 = vector.extract_strided_slice %1 {offsets = [0, 34], sizes = [8, 258], strides = [1, 1]} : vector<8x296xf32> to vector<8x258xf32>
    %c272 = arith.constant 272 : index
    %c0_37 = arith.constant 0 : index
    %71 = vector.load %arg6[%c272, %c0_37] : memref<312x258xf32, #tpu.memory_space<vmem>>, vector<8x258xf32>
    tpu.vector_store %arg6[%c272, %c0_37], %70 {strides = array<i32>} : memref<312x258xf32, #tpu.memory_space<vmem>>, vector<8x258xf32>,
    %72 = vector.extract_strided_slice %1 {offsets = [0, 35], sizes = [8, 258], strides = [1, 1]} : vector<8x296xf32> to vector<8x258xf32>
    %c280 = arith.constant 280 : index
    %c0_38 = arith.constant 0 : index
    %73 = vector.load %arg6[%c280, %c0_38] : memref<312x258xf32, #tpu.memory_space<vmem>>, vector<8x258xf32>
    tpu.vector_store %arg6[%c280, %c0_38], %72 {strides = array<i32>} : memref<312x258xf32, #tpu.memory_space<vmem>>, vector<8x258xf32>,
    %74 = vector.extract_strided_slice %1 {offsets = [0, 36], sizes = [8, 258], strides = [1, 1]} : vector<8x296xf32> to vector<8x258xf32>
    %c288 = arith.constant 288 : index
    %c0_39 = arith.constant 0 : index
    %75 = vector.load %arg6[%c288, %c0_39] : memref<312x258xf32, #tpu.memory_space<vmem>>, vector<8x258xf32>
    tpu.vector_store %arg6[%c288, %c0_39], %74 {strides = array<i32>} : memref<312x258xf32, #tpu.memory_space<vmem>>, vector<8x258xf32>,
    %76 = vector.extract_strided_slice %1 {offsets = [0, 37], sizes = [8, 258], strides = [1, 1]} : vector<8x296xf32> to vector<8x258xf32>
    %c296 = arith.constant 296 : index
    %c0_40 = arith.constant 0 : index
    %77 = vector.load %arg6[%c296, %c0_40] : memref<312x258xf32, #tpu.memory_space<vmem>>, vector<8x258xf32>
    tpu.vector_store %arg6[%c296, %c0_40], %76 {strides = array<i32>} : memref<312x258xf32, #tpu.memory_space<vmem>>, vector<8x258xf32>,
    %78 = vector.extract_strided_slice %1 {offsets = [0, 38], sizes = [8, 258], strides = [1, 1]} : vector<8x296xf32> to vector<8x258xf32>
    %c304 = arith.constant 304 : index
    %c0_41 = arith.constant 0 : index
    %79 = vector.load %arg6[%c304, %c0_41] : memref<312x258xf32, #tpu.memory_space<vmem>>, vector<8x258xf32>
    tpu.vector_store %arg6[%c304, %c0_41], %78 {strides = array<i32>} : memref<312x258xf32, #tpu.memory_space<vmem>>, vector<8x258xf32>,
    %c0_42 = arith.constant 0 : index
    %c0_43 = arith.constant 0 : index
    %80 = vector.load %arg3[%c0_42, %c0_43] : memref<16x312xf32, #tpu.memory_space<vmem>>, vector<16x312xf32>
    %c0_44 = arith.constant 0 : index
    %c0_45 = arith.constant 0 : index
    %81 = vector.load %arg6[%c0_44, %c0_45] : memref<312x258xf32, #tpu.memory_space<vmem>>, vector<312x258xf32>
    %cst = arith.constant dense<0.000000e+00> : vector<16x258xf32>
    %82 = tpu.matmul %80, %81, %cst {dimension_numbers = #tpu.dot_dimension_numbers<[1], [0], [0], [1], [0, 0, 1, 1], [], []>} : vector<16x312xf32>, vector<312x258xf32>, vector<16x258xf32> -> vector<16x258xf32>
    %83 = vector.extract_strided_slice %82 {offsets = [0, 1], sizes = [8, 256], strides = [1, 1]} : vector<16x258xf32> to vector<8x256xf32>
    %84 = vector.extract_strided_slice %82 {offsets = [8, 0], sizes = [8, 258], strides = [1, 1]} : vector<16x258xf32> to vector<8x258xf32>
    %c0_46 = arith.constant 0 : index
    %c0_47 = arith.constant 0 : index
    %c0_48 = arith.constant 0 : index
    %85 = vector.load %arg2[%c0_46, %c0_47, %c0_48] : memref<1x8x258xi32, #tpu.memory_space<vmem>>, vector<1x8x258xi32>
    %86 = vector.shape_cast %85 : vector<1x8x258xi32> to vector<8x258xi32>
    %87 = tpu.iota {dimensions = array<i32: 1>} : vector<8x256xi32>
    %cst_49 = arith.constant 0.000000e+00 : f32
    %88 = vector.broadcast %cst_49 : f32 to vector<8x256xf32>
    %89 = vector.extract_strided_slice %86 {offsets = [0, 0], sizes = [8, 256], strides = [1, 1]} : vector<8x258xi32> to vector<8x256xi32>
    %90 = vector.extract_strided_slice %84 {offsets = [0, 0], sizes = [8, 256], strides = [1, 1]} : vector<8x258xf32> to vector<8x256xf32>
    %91 = arith.cmpi eq, %89, %87 : vector<8x256xi32>
    %92 = arith.select %91, %90, %88 : vector<8x256xi1>, vector<8x256xf32>
    %93 = vector.extract_strided_slice %86 {offsets = [0, 1], sizes = [8, 256], strides = [1, 1]} : vector<8x258xi32> to vector<8x256xi32>
    %94 = vector.extract_strided_slice %84 {offsets = [0, 1], sizes = [8, 256], strides = [1, 1]} : vector<8x258xf32> to vector<8x256xf32>
    %95 = arith.cmpi eq, %93, %87 : vector<8x256xi32>
    %96 = arith.select %95, %94, %92 : vector<8x256xi1>, vector<8x256xf32>
    %97 = vector.extract_strided_slice %86 {offsets = [0, 2], sizes = [8, 256], strides = [1, 1]} : vector<8x258xi32> to vector<8x256xi32>
    %98 = vector.extract_strided_slice %84 {offsets = [0, 2], sizes = [8, 256], strides = [1, 1]} : vector<8x258xf32> to vector<8x256xf32>
    %99 = arith.cmpi eq, %97, %87 : vector<8x256xi32>
    %100 = arith.select %99, %98, %96 : vector<8x256xi1>, vector<8x256xf32>
    %101 = arith.addf %83, %100 : vector<8x256xf32>
    %c0_50 = arith.constant 0 : index
    %c0_51 = arith.constant 0 : index
    %c0_52 = arith.constant 0 : index
    %102 = vector.load %arg4[%c0_50, %c0_51, %c0_52] : memref<1x8x256xf32, #tpu.memory_space<vmem>>, vector<1x8x256xf32>
    %103 = vector.shape_cast %102 : vector<1x8x256xf32> to vector<8x256xf32>
    %104 = vector.shape_cast %101 : vector<8x256xf32> to vector<1x8x256xf32>
    tpu.vector_store %arg4[%c0_50, %c0_51, %c0_52], %104 {strides = array<i32>} : memref<1x8x256xf32, #tpu.memory_space<vmem>>, vector<1x8x256xf32>,
    %105 = vector.extract_strided_slice %101 {offsets = [0, 0], sizes = [8, 128], strides = [1, 1]} : vector<8x256xf32> to vector<8x128xf32>
    %106 = arith.mulf %105, %105 : vector<8x128xf32>
    %107 = vector.extract_strided_slice %101 {offsets = [0, 128], sizes = [8, 128], strides = [1, 1]} : vector<8x256xf32> to vector<8x128xf32>
    %108 = arith.addf %105, %107 : vector<8x128xf32>
    %109 = arith.mulf %107, %107 : vector<8x128xf32>
    %110 = arith.addf %106, %109 : vector<8x128xf32>
    %c0_53 = arith.constant 0 : index
    %c0_54 = arith.constant 0 : index
    %c0_55 = arith.constant 0 : index
    %c0_56 = arith.constant 0 : index
    %111 = vector.load %arg5[%c0_53, %c0_54, %c0_55, %c0_56] : memref<1x2x8x128xf32, #tpu.memory_space<vmem>>, vector<1x1x8x128xf32>
    %112 = vector.shape_cast %111 : vector<1x1x8x128xf32> to vector<8x128xf32>
    %113 = vector.shape_cast %108 : vector<8x128xf32> to vector<1x1x8x128xf32>
    tpu.vector_store %arg5[%c0_53, %c0_54, %c0_55, %c0_56], %113 {strides = array<i32>} : memref<1x2x8x128xf32, #tpu.memory_space<vmem>>, vector<1x1x8x128xf32>,
    %c0_57 = arith.constant 0 : index
    %c1 = arith.constant 1 : index
    %c0_58 = arith.constant 0 : index
    %c0_59 = arith.constant 0 : index
    %114 = vector.load %arg5[%c0_57, %c1, %c0_58, %c0_59] : memref<1x2x8x128xf32, #tpu.memory_space<vmem>>, vector<1x1x8x128xf32>
    %115 = vector.shape_cast %114 : vector<1x1x8x128xf32> to vector<8x128xf32>
    %116 = vector.shape_cast %110 : vector<8x128xf32> to vector<1x1x8x128xf32>
    tpu.vector_store %arg5[%c0_57, %c1, %c0_58, %c0_59], %116 {strides = array<i32>} : memref<1x2x8x128xf32, #tpu.memory_space<vmem>>, vector<1x1x8x128xf32>,
    return
  }
  func.func @transform_0(%arg0: i32) -> (i32, i32, i32) {
    %c0_i32 = arith.constant 0 : i32
    %c0_i32_0 = arith.constant 0 : i32
    %c0_i32_1 = arith.constant 0 : i32
    return %arg0, %c0_i32, %c0_i32_0 : i32, i32, i32
  }
  func.func @transform_1(%arg0: i32) -> (i32, i32, i32) {
    %c0_i32 = arith.constant 0 : i32
    %c0_i32_0 = arith.constant 0 : i32
    %c0_i32_1 = arith.constant 0 : i32
    return %arg0, %c0_i32, %c0_i32_0 : i32, i32, i32
  }
  func.func @transform_2(%arg0: i32) -> (i32, i32) {
    %c0_i32 = arith.constant 0 : i32
    %c0_i32_0 = arith.constant 0 : i32
    %c0_i32_1 = arith.constant 0 : i32
    return %c0_i32, %c0_i32_0 : i32, i32
  }
  func.func @transform_3(%arg0: i32) -> (i32, i32, i32) {
    %c0_i32 = arith.constant 0 : i32
    %c0_i32_0 = arith.constant 0 : i32
    %c0_i32_1 = arith.constant 0 : i32
    return %arg0, %c0_i32, %c0_i32_0 : i32, i32, i32
  }
  func.func @transform_4(%arg0: i32) -> (i32, i32, i32, i32) {
    %c0_i32 = arith.constant 0 : i32
    %c0_i32_0 = arith.constant 0 : i32
    %c0_i32_1 = arith.constant 0 : i32
    %c0_i32_2 = arith.constant 0 : i32
    return %arg0, %c0_i32, %c0_i32_0, %c0_i32_1 : i32, i32, i32, i32
  }
}

</mosaic_0001>

<llo_original>
// kernel: tpu_custom_call.1
$region0: #{tpu_custom_call.1}
  #allocation0 [shape = 'u32[]', space=smem, size = 0x4, offset = 0x4, fixed_abs, tag = 'smem constant byte address 0x4 - core index']
  #allocation1 [shape = 'u32[144,128]{1,0:T(1,128)}', space=vmem, size = 0x12000, scoped, tag = 'internal scratch']
  #allocation2 [shape = 'f32[312,258]{1,0:T(8,128)}', space=vmem, size = 0x75000, scoped, tag = 'scratch operand']
  %s0 = inlined_call_operand.hbm [shape: f32[2,8,296], index: 0, kind: input, shape index: {}]
  %s1 = inlined_call_operand.hbm [shape: s32[2,8,258], index: 1, kind: input, shape index: {}]
  %s2 = inlined_call_operand.hbm [shape: f32[16,312], index: 2, kind: input, shape index: {}]
  %s3 = inlined_call_operand.hbm [shape: f32[2,8,256], index: 3, kind: output, shape index: {0}]
  %s4 = inlined_call_operand.hbm [shape: f32[2,2,8,128], index: 4, kind: output, shape index: {1}]
  %5 = xla_tuple %s3, %s4
  %s6 = sld [smem:[#allocation0]]
  $region65: #{tpu_custom_call.1} parent=0
    _
  %s8 = ssub.s32 1, %s6
  %s9 = scalar_select 0, %s8, %s6
  $region1: #{tpu_custom_call.1} parent=0
    #allocation3 [shape = 'u8[24576]{0}', space=vmem, size = 0x6000, scoped, tag = 'input window, operand 0']
    #allocation4 [shape = 's32[2]{0}', space=sflag, size = 0x8, scoped, tag = 'scoped memory for tpu_custom_call.1']
    #allocation5 [shape = 's32[2]{0}', space=sflag, size = 0x8, scoped, tag = 'scoped memory for tpu_custom_call.1']
    #allocation6 [shape = 'u8[24576]{0}', space=vmem, size = 0x6000, scoped, tag = 'input window, operand 1']
    #allocation7 [shape = 's32[2]{0}', space=sflag, size = 0x8, scoped, tag = 'scoped memory for tpu_custom_call.1']
    #allocation8 [shape = 'u8[24576]{0}', space=vmem, size = 0x6000, scoped, tag = 'input window, operand 2, single buffered']
    #allocation9 [shape = 'u8[16384]{0}', space=vmem, size = 0x4000, scoped, tag = 'output window, operand 0']
    #allocation10 [shape = 'u8[16384]{0}', space=vmem, size = 0x4000, scoped, tag = 'output window, operand 1']
    #allocation11 [shape = 's32[2]{0}', space=sflag, size = 0x8, scoped, tag = 'scoped memory for tpu_custom_call.1']
    %10 = vsyncpa [#allocation4], 0
    %s11 = scalar_lea.sflag [#allocation4], 1
    %12 = vsyncpa %s11, 0
    %13 = vsyncpa [#allocation7], 0
    %s14 = scalar_lea.sflag [#allocation7], 1
    %15 = vsyncpa %s14, 0
    %16 = vsyncpa [#allocation5], 0
    %s17 = scalar_lea.sflag [#allocation5], 1
    %18 = vsyncpa %s17, 0
    %19 = vsyncpa [#allocation11], 0
    %s20 = scalar_lea.sflag [#allocation11], 1
    %21 = vsyncpa %s20, 0
    loop: start=0, step=1, limit=4
    $region2: #{tpu_custom_call.1} parent=1 // loop_pre_header
      _
    $region3: #{tpu_custom_call.1} parent=1 // loop_header
      %s23 = sphi 0, %s27
      %p24 = scmp.ge.s32.totalorder %s23, 4
      %s33 = sphi 0, %s35
      %s36 = sphi 0, %s33
      %s37 = sphi 0, %s36
      %s53 = sphi 0, %s37
      %s59 = sphi 0, %s61
      %s62 = sphi 0, %s59
      %s63 = sphi 0, %s62
      %s79 = sphi 0, %s63
      %s83 = sphi 0, %s83
      %s85 = sphi 0, %s83
      %s86 = sphi 0, %s85
      %s100 = sphi 0, %s86
      %s106 = sphi 0, %s108
      %s109 = sphi 0, %s106
      %s110 = sphi 0, %s109
      %s126 = sphi 0, %s110
      %s132 = sphi 0, %s134
      %s135 = sphi 0, %s132
      %s136 = sphi 0, %s135
      %s152 = sphi 0, %s136
    $region4: #{tpu_custom_call.1} parent=1 // loop_header_branch
      %26 = sbr.rel (%p24) target = $region8
    $region5: #{tpu_custom_call.1} parent=1 // loop_body
      %s28 = ssub.s32 %s23, 1
      %s29 = ssub.s32 %s23, 2
      %s30 = sadd.s32 %s23, 1
      %s31 = ssub.s32 %s23, %s30
      %p32 = scmp.eq.s32.totalorder %s31, 0
      %s34 = sadd.s32 %s33, 1
      %s35 = scalar_select %p32, %s33, %s34
      %p38 = pneg %p32
      %p39 = scmp.eq.s32.totalorder %s23, 1
      %p40 = por %p38, %p39
      %p41 = scmp.ne.s32.totalorder %s33, %s36
      %p42 = scmp.eq.s32.totalorder %s23, 0
      %p43 = por %p41, %p42
      %p44 = scmp.ne.s32.totalorder %s33, %s36
      %p45 = scmp.eq.s32.totalorder %s28, 1
      %p46 = por %p44, %p45
      %p47 = scmp.ne.s32.totalorder %s36, %s37
      %p48 = scmp.eq.s32.totalorder %s28, 0
      %p49 = por %p47, %p48
      %p50 = scmp.ne.s32.totalorder %s36, %s37
      %p51 = scmp.eq.s32.totalorder %s29, 1
      %p52 = por %p50, %p51
      %p54 = scmp.ne.s32.totalorder %s37, %s53
      %p55 = scmp.eq.s32.totalorder %s29, 0
      %p56 = por %p54, %p55
      %s57 = ssub.s32 %s23, %s30
      %p58 = scmp.eq.s32.totalorder %s57, 0
      %s60 = sadd.s32 %s59, 1
      %s61 = scalar_select %p58, %s59, %s60
      %p64 = pneg %p58
      %p65 = scmp.eq.s32.totalorder %s23, 1
      %p66 = por %p64, %p65
      %p67 = scmp.ne.s32.totalorder %s59, %s62
      %p68 = scmp.eq.s32.totalorder %s23, 0
      %p69 = por %p67, %p68
      %p70 = scmp.ne.s32.totalorder %s59, %s62
      %p71 = scmp.eq.s32.totalorder %s28, 1
      %p72 = por %p70, %p71
      %p73 = scmp.ne.s32.totalorder %s62, %s63
      %p74 = scmp.eq.s32.totalorder %s28, 0
      %p75 = por %p73, %p74
      %p76 = scmp.ne.s32.totalorder %s62, %s63
      %p77 = scmp.eq.s32.totalorder %s29, 1
      %p78 = por %p76, %p77
      %p80 = scmp.ne.s32.totalorder %s63, %s79
      %p81 = scmp.eq.s32.totalorder %s29, 0
      %p82 = por %p80, %p81
      %s84 = sadd.s32 %s83, 1
      %p87 = scmp.eq.s32.totalorder %s23, 1
      %p88 = scmp.ne.s32.totalorder %s83, %s85
      %p89 = scmp.eq.s32.totalorder %s23, 0
      %p90 = por %p88, %p89
      %p91 = scmp.ne.s32.totalorder %s83, %s85
      %p92 = scmp.eq.s32.totalorder %s28, 1
      %p93 = por %p91, %p92
      %p94 = scmp.ne.s32.totalorder %s85, %s86
      %p95 = scmp.eq.s32.totalorder %s28, 0
      %p96 = por %p94, %p95
      %p97 = scmp.ne.s32.totalorder %s85, %s86
      %p98 = scmp.eq.s32.totalorder %s29, 1
      %p99 = por %p97, %p98
      %p101 = scmp.ne.s32.totalorder %s86, %s100
      %p102 = scmp.eq.s32.totalorder %s29, 0
      %p103 = por %p101, %p102
      %s104 = ssub.s32 %s23, %s30
      %p105 = scmp.eq.s32.totalorder %s104, 0
      %s107 = sadd.s32 %s106, 1
      %s108 = scalar_select %p105, %s106, %s107
      %p111 = pneg %p105
      %p112 = scmp.eq.s32.totalorder %s23, 1
      %p113 = por %p111, %p112
      %p114 = scmp.ne.s32.totalorder %s106, %s109
      %p115 = scmp.eq.s32.totalorder %s23, 0
      %p116 = por %p114, %p115
      %p117 = scmp.ne.s32.totalorder %s106, %s109
      %p118 = scmp.eq.s32.totalorder %s28, 1
      %p119 = por %p117, %p118
      %p120 = scmp.ne.s32.totalorder %s109, %s110
      %p121 = scmp.eq.s32.totalorder %s28, 0
      %p122 = por %p120, %p121
      %p123 = scmp.ne.s32.totalorder %s109, %s110
      %p124 = scmp.eq.s32.totalorder %s29, 1
      %p125 = por %p123, %p124
      %p127 = scmp.ne.s32.totalorder %s110, %s126
      %p128 = scmp.eq.s32.totalorder %s29, 0
      %p129 = por %p127, %p128
      %s130 = ssub.s32 %s23, %s30
      %p131 = scmp.eq.s32.totalorder %s130, 0
      %s133 = sadd.s32 %s132, 1
      %s134 = scalar_select %p131, %s132, %s133
      %p137 = pneg %p131
      %p138 = scmp.eq.s32.totalorder %s23, 1
      %p139 = por %p137, %p138
      %p140 = scmp.ne.s32.totalorder %s132, %s135
      %p141 = scmp.eq.s32.totalorder %s23, 0
      %p142 = por %p140, %p141
      %p143 = scmp.ne.s32.totalorder %s132, %s135
      %p144 = scmp.eq.s32.totalorder %s28, 1
      %p145 = por %p143, %p144
      %p146 = scmp.ne.s32.totalorder %s135, %s136
      %p147 = scmp.eq.s32.totalorder %s28, 0
      %p148 = por %p146, %p147
      %p149 = scmp.ne.s32.totalorder %s135, %s136
      %p150 = scmp.eq.s32.totalorder %s29, 1
      %p151 = por %p149, %p150
      %p153 = scmp.ne.s32.totalorder %s136, %s152
      %p154 = scmp.eq.s32.totalorder %s29, 0
      %p155 = por %p153, %p154
      %p156 = scmp.le.s32.totalorder 1, %s23
      %p157 = scmp.lt.s32.totalorder %s23, 3
      %p158 = pnand %p156, %p157
      %p159 = pneg %p158
      // Predicated region
      $region9: #{tpu_custom_call.1} parent=5 // pred_check
        _
      $region10: #{tpu_custom_call.1} parent=5 // pred_check_branch
        %161 = sbr.rel (%p158) target = $region12
      $region11: #{tpu_custom_call.1} parent=5 // pred_region
        %s162 = ssub.s32 %s23, 1
        // Predicated region
        $region13: #{tpu_custom_call.1} parent=11 // pred_check
          %p163 = pneg %p96
        $region14: #{tpu_custom_call.1} parent=11 // pred_check_branch
          %165 = sbr.rel (%p163) target = $region16
        $region15: #{tpu_custom_call.1} parent=11 // pred_region
          %s167 = ssub.s32 768, 768
          %168 = vsyncadd [#allocation7], %s167
          %s169 = sshll.u32 [#allocation8], 4
          %s170 = int_to_ptr.vmem [resolvable:$true] %s169
          %175 = dma.hbm_to_vmem [thread:$0]  %s2, 768, %s170, [#allocation7], 384, 384, 24
        $region16: #{tpu_custom_call.1} parent=11 // pred_fallthru
          _
      $region12: #{tpu_custom_call.1} parent=5 // pred_fallthru
        _
      %p176 = scmp.lt.s32.totalorder %s23, 2
      // Predicated region
      $region17: #{tpu_custom_call.1} parent=5 // pred_check
        %p177 = pneg %p176
      $region18: #{tpu_custom_call.1} parent=5 // pred_check_branch
        %179 = sbr.rel (%p177) target = $region20
      $region19: #{tpu_custom_call.1} parent=5 // pred_region
        // Predicated region
        $region21: #{tpu_custom_call.1} parent=19 // pred_check
          %p180 = pneg %p43
        $region22: #{tpu_custom_call.1} parent=19 // pred_check_branch
          %182 = sbr.rel (%p180) target = $region24
        $region23: #{tpu_custom_call.1} parent=19 // pred_region
          %s183 = sand.u32 %s33, 1
          %s184 = scalar_lea.sflag [#allocation4], %s183
          %s185 = sand.u32 %s33, 1
          %s186 = smul.addr %s185, 24
          %s187 = scalar_lea.vmem [#allocation3], %s186
          %s189 = ssub.s32 384, 384
          %190 = vsyncadd %s184, %s189
          %s191 = smul.addr %s23, 3
          %s192 = smul.addr %s191, 128
          %s193 = scalar_lea.hbm %s0, %s192
          %s195 = sshll.u32 %s187, 4
          %s196 = int_to_ptr.vmem [resolvable:$true] %s195
          %198 = dma.hbm_to_vmem [thread:$0]  %s193, 384, %s196, %s184
        $region24: #{tpu_custom_call.1} parent=19 // pred_fallthru
          _
        // Predicated region
        $region25: #{tpu_custom_call.1} parent=19 // pred_check
          %p199 = pneg %p69
        $region26: #{tpu_custom_call.1} parent=19 // pred_check_branch
          %201 = sbr.rel (%p199) target = $region28
        $region27: #{tpu_custom_call.1} parent=19 // pred_region
          %s202 = sand.u32 %s23, 1
          %s203 = scalar_lea.sflag [#allocation7], %s202
          %s204 = sand.u32 %s59, 1
          %s205 = smul.addr %s204, 24
          %s206 = scalar_lea.vmem [#allocation6], %s205
          %s208 = ssub.s32 384, 384
          %209 = vsyncadd %s203, %s208
          %s210 = smul.addr %s23, 3
          %s211 = smul.addr %s210, 128
          %s212 = scalar_lea.hbm %s1, %s211
          %s214 = sshll.u32 %s206, 4
          %s215 = int_to_ptr.vmem [resolvable:$true] %s214
          %217 = dma.hbm_to_vmem [thread:$0]  %s212, 384, %s215, %s203
        $region28: #{tpu_custom_call.1} parent=19 // pred_fallthru
          _
      $region20: #{tpu_custom_call.1} parent=5 // pred_fallthru
        _
      %p218 = scmp.le.s32.totalorder 1, %s23
      %p219 = scmp.lt.s32.totalorder %s23, 3
      %p220 = pnand %p218, %p219
      %p221 = pneg %p220
      // Predicated region
      $region29: #{tpu_custom_call.1} parent=5 // pred_check
        _
      $region30: #{tpu_custom_call.1} parent=5 // pred_check_branch
        %223 = sbr.rel (%p220) target = $region32
      $region31: #{tpu_custom_call.1} parent=5 // pred_region
        %s224 = ssub.s32 %s23, 1
        %s225 = sand.u32 %s36, 1
        %s226 = scalar_lea.sflag [#allocation4], %s225
        %s227 = sand.u32 %s36, 1
        %s228 = smul.addr %s227, 24
        %s229 = scalar_lea.vmem [#allocation3], %s228
        // Predicated region
        $region33: #{tpu_custom_call.1} parent=31 // pred_check
          %p230 = pneg %p49
        $region34: #{tpu_custom_call.1} parent=31 // pred_check_branch
          %232 = sbr.rel (%p230) target = $region36
        $region35: #{tpu_custom_call.1} parent=31 // pred_region
          %233 = dma.done %s226, 384
        $region36: #{tpu_custom_call.1} parent=31 // pred_fallthru
          _
        %s234 = sand.u32 %s28, 1
        %s235 = scalar_lea.sflag [#allocation7], %s234
        %s236 = sand.u32 %s62, 1
        %s237 = smul.addr %s236, 24
        %s238 = scalar_lea.vmem [#allocation6], %s237
        // Predicated region
        $region37: #{tpu_custom_call.1} parent=31 // pred_check
          %p239 = pneg %p75
        $region38: #{tpu_custom_call.1} parent=31 // pred_check_branch
          %241 = sbr.rel (%p239) target = $region40
        $region39: #{tpu_custom_call.1} parent=31 // pred_region
          %242 = dma.done %s235, 384
        $region40: #{tpu_custom_call.1} parent=31 // pred_fallthru
          _
        // Predicated region
        $region41: #{tpu_custom_call.1} parent=31 // pred_check
          %p243 = pneg %p96
        $region42: #{tpu_custom_call.1} parent=31 // pred_check_branch
          %245 = sbr.rel (%p243) target = $region44
        $region43: #{tpu_custom_call.1} parent=31 // pred_region
          %246 = dma.done [#allocation7], 768
        $region44: #{tpu_custom_call.1} parent=31 // pred_fallthru
          _
        %s247 = sand.u32 %s36, 1
        %s248 = scalar_lea.sflag [#allocation4], %s247
        %s249 = sand.u32 %s36, 1
        %s250 = smul.addr %s249, 24
        %s251 = scalar_lea.vmem [#allocation3], %s250
        %p252 = pneg %p49
        %p253 = pneg %p46
        %s254 = sand.u32 %s28, 1
        %s255 = scalar_lea.sflag [#allocation7], %s254
        %s256 = sand.u32 %s62, 1
        %s257 = smul.addr %s256, 24
        %s258 = scalar_lea.vmem [#allocation6], %s257
        %p259 = pneg %p75
        %p260 = pneg %p72
        %p261 = pneg %p96
        %p262 = pneg %p93
        %p263 = pneg %p122
        %p264 = pneg %p119
        %s265 = sand.u32 %s109, 1
        %s266 = scalar_lea.sflag [#allocation5], %s265
        %s267 = sand.u32 %s109, 1
        %s268 = smul.addr %s267, 16
        %s269 = scalar_lea.vmem [#allocation9], %s268
        %p270 = pneg %p148
        %p271 = pneg %p145
        %s272 = sand.u32 %s135, 1
        %s273 = scalar_lea.sflag [#allocation11], %s272
        %s274 = sand.u32 %s135, 1
        %s275 = smul.addr %s274, 16
        %s276 = scalar_lea.vmem [#allocation10], %s275
        %v277 = vld [vmem:[%s229] sm:$0xff]
        %v278 = vld [vmem:[%s229 + $0x8] sm:$0xff]
        %v279 = vld [vmem:[%s229 + $0x10] sm:$0xff]
        %280 = vst [vmem:[#allocation2] sm:$0xff] %v277
        %281 = vst [vmem:[#allocation2 + $0x8] sm:$0xff] %v278
        %vm282 = vcmask 15360
        %283 = vst.msk [vmem:[#allocation2 + $0x10] sm:$0xff] %vm282, %v279
        %287 = vrot.lane.b32.xlu0 %v277, 127
        %v288 = vpop.permute.xlu0 %287
        %289 = vrot.lane.b32.xlu0 %v278, 127
        %v290 = vpop.permute.xlu0 %289
        %291 = vrot.lane.b32.xlu0 %v279, 127
        %v292 = vpop.permute.xlu0 %291
        %vm293 = vcmask 1039360
        %v294 = vsel %vm293, %v288, %v290
        %v295 = vsel %vm293, %v290, %v292
        %299 = vst [vmem:[#allocation2 + $0x18] sm:$0xff] %v294
        %300 = vst [vmem:[#allocation2 + $0x20] sm:$0xff] %v295
        %301 = vst.msk [vmem:[#allocation2 + $0x28] sm:$0xff] %vm282, %v292
        %302 = vrot.lane.b32.xlu0 %v277, 126
        %v303 = vpop.permute.xlu0 %302
        %304 = vrot.lane.b32.xlu0 %v278, 126
        %v305 = vpop.permute.xlu0 %304
        %306 = vrot.lane.b32.xlu0 %v279, 126
        %v307 = vpop.permute.xlu0 %306
        %vm308 = vcmask 1031168
        %v309 = vsel %vm308, %v303, %v305
        %v310 = vsel %vm308, %v305, %v307
        %314 = vst [vmem:[#allocation2 + $0x30] sm:$0xff] %v309
        %315 = vst [vmem:[#allocation2 + $0x38] sm:$0xff] %v310
        %316 = vst.msk [vmem:[#allocation2 + $0x40] sm:$0xff] %vm282, %v307
        %317 = vrot.lane.b32.xlu0 %v277, 125
        %v318 = vpop.permute.xlu0 %317
        %319 = vrot.lane.b32.xlu0 %v278, 125
        %v320 = vpop.permute.xlu0 %319
        %321 = vrot.lane.b32.xlu0 %v279, 125
        %v322 = vpop.permute.xlu0 %321
        %vm323 = vcmask 1022976
        %v324 = vsel %vm323, %v318, %v320
        %v325 = vsel %vm323, %v320, %v322
        %329 = vst [vmem:[#allocation2 + $0x48] sm:$0xff] %v324
        %330 = vst [vmem:[#allocation2 + $0x50] sm:$0xff] %v325
        %331 = vst.msk [vmem:[#allocation2 + $0x58] sm:$0xff] %vm282, %v322
        %332 = vrot.lane.b32.xlu0 %v277, 124
        %v333 = vpop.permute.xlu0 %332
        %334 = vrot.lane.b32.xlu0 %v278, 124
        %v335 = vpop.permute.xlu0 %334
        %336 = vrot.lane.b32.xlu0 %v279, 124
        %v337 = vpop.permute.xlu0 %336
        %vm338 = vcmask 1014784
        %v339 = vsel %vm338, %v333, %v335
        %v340 = vsel %vm338, %v335, %v337
        %344 = vst [vmem:[#allocation2 + $0x60] sm:$0xff] %v339
        %345 = vst [vmem:[#allocation2 + $0x68] sm:$0xff] %v340
        %346 = vst.msk [vmem:[#allocation2 + $0x70] sm:$0xff] %vm282, %v337
        %347 = vrot.lane.b32.xlu0 %v277, 123
        %v348 = vpop.permute.xlu0 %347
        %349 = vrot.lane.b32.xlu0 %v278, 123
        %v350 = vpop.permute.xlu0 %349
        %351 = vrot.lane.b32.xlu0 %v279, 123
        %v352 = vpop.permute.xlu0 %351
        %vm353 = vcmask 1006592
        %v354 = vsel %vm353, %v348, %v350
        %v355 = vsel %vm353, %v350, %v352
        %359 = vst [vmem:[#allocation2 + $0x78] sm:$0xff] %v354
        %360 = vst [vmem:[#allocation2 + $0x80] sm:$0xff] %v355
        %361 = vst.msk [vmem:[#allocation2 + $0x88] sm:$0xff] %vm282, %v352
        %362 = vrot.lane.b32.xlu0 %v277, 122
        %v363 = vpop.permute.xlu0 %362
        %364 = vrot.lane.b32.xlu0 %v278, 122
        %v365 = vpop.permute.xlu0 %364
        %366 = vrot.lane.b32.xlu0 %v279, 122
        %v367 = vpop.permute.xlu0 %366
        %vm368 = vcmask 998400
        %v369 = vsel %vm368, %v363, %v365
        %v370 = vsel %vm368, %v365, %v367
        %374 = vst [vmem:[#allocation2 + $0x90] sm:$0xff] %v369
        %375 = vst [vmem:[#allocation2 + $0x98] sm:$0xff] %v370
        %376 = vst.msk [vmem:[#allocation2 + $0xa0] sm:$0xff] %vm282, %v367
        %377 = vrot.lane.b32.xlu0 %v277, 121
        %v378 = vpop.permute.xlu0 %377
        %379 = vrot.lane.b32.xlu0 %v278, 121
        %v380 = vpop.permute.xlu0 %379
        %381 = vrot.lane.b32.xlu0 %v279, 121
        %v382 = vpop.permute.xlu0 %381
        %vm383 = vcmask 990208
        %v384 = vsel %vm383, %v378, %v380
        %v385 = vsel %vm383, %v380, %v382
        %389 = vst [vmem:[#allocation2 + $0xa8] sm:$0xff] %v384
        %390 = vst [vmem:[#allocation2 + $0xb0] sm:$0xff] %v385
        %391 = vst.msk [vmem:[#allocation2 + $0xb8] sm:$0xff] %vm282, %v382
        %392 = vrot.lane.b32.xlu0 %v277, 120
        %v393 = vpop.permute.xlu0 %392
        %394 = vrot.lane.b32.xlu0 %v278, 120
        %v395 = vpop.permute.xlu0 %394
        %396 = vrot.lane.b32.xlu0 %v279, 120
        %v397 = vpop.permute.xlu0 %396
        %vm398 = vcmask 982016
        %v399 = vsel %vm398, %v393, %v395
        %v400 = vsel %vm398, %v395, %v397
        %404 = vst [vmem:[#allocation2 + $0xc0] sm:$0xff] %v399
        %405 = vst [vmem:[#allocation2 + $0xc8] sm:$0xff] %v400
        %406 = vst.msk [vmem:[#allocation2 + $0xd0] sm:$0xff] %vm282, %v397
        %407 = vrot.lane.b32.xlu0 %v277, 119
        %v408 = vpop.permute.xlu0 %407
        %409 = vrot.lane.b32.xlu0 %v278, 119
        %v410 = vpop.permute.xlu0 %409
        %411 = vrot.lane.b32.xlu0 %v279, 119
        %v412 = vpop.permute.xlu0 %411
        %vm413 = vcmask 973824
        %v414 = vsel %vm413, %v408, %v410
        %v415 = vsel %vm413, %v410, %v412
        %419 = vst [vmem:[#allocation2 + $0xd8] sm:$0xff] %v414
        %420 = vst [vmem:[#allocation2 + $0xe0] sm:$0xff] %v415
        %421 = vst.msk [vmem:[#allocation2 + $0xe8] sm:$0xff] %vm282, %v412
        %422 = vrot.lane.b32.xlu0 %v277, 118
        %v423 = vpop.permute.xlu0 %422
        %424 = vrot.lane.b32.xlu0 %v278, 118
        %v425 = vpop.permute.xlu0 %424
        %426 = vrot.lane.b32.xlu0 %v279, 118
        %v427 = vpop.permute.xlu0 %426
        %vm428 = vcmask 965632
        %v429 = vsel %vm428, %v423, %v425
        %v430 = vsel %vm428, %v425, %v427
        %434 = vst [vmem:[#allocation2 + $0xf0] sm:$0xff] %v429
        %435 = vst [vmem:[#allocation2 + $0xf8] sm:$0xff] %v430
        %436 = vst.msk [vmem:[#allocation2 + $0x100] sm:$0xff] %vm282, %v427
        %437 = vrot.lane.b32.xlu0 %v277, 117
        %v438 = vpop.permute.xlu0 %437
        %439 = vrot.lane.b32.xlu0 %v278, 117
        %v440 = vpop.permute.xlu0 %439
        %441 = vrot.lane.b32.xlu0 %v279, 117
        %v442 = vpop.permute.xlu0 %441
        %vm443 = vcmask 957440
        %v444 = vsel %vm443, %v438, %v440
        %v445 = vsel %vm443, %v440, %v442
        %449 = vst [vmem:[#allocation2 + $0x108] sm:$0xff] %v444
        %450 = vst [vmem:[#allocation2 + $0x110] sm:$0xff] %v445
        %451 = vst.msk [vmem:[#allocation2 + $0x118] sm:$0xff] %vm282, %v442
        %452 = vrot.lane.b32.xlu0 %v277, 116
        %v453 = vpop.permute.xlu0 %452
        %454 = vrot.lane.b32.xlu0 %v278, 116
        %v455 = vpop.permute.xlu0 %454
        %456 = vrot.lane.b32.xlu0 %v279, 116
        %v457 = vpop.permute.xlu0 %456
        %vm458 = vcmask 949248
        %v459 = vsel %vm458, %v453, %v455
        %v460 = vsel %vm458, %v455, %v457
        %464 = vst [vmem:[#allocation2 + $0x120] sm:$0xff] %v459
        %465 = vst [vmem:[#allocation2 + $0x128] sm:$0xff] %v460
        %466 = vst.msk [vmem:[#allocation2 + $0x130] sm:$0xff] %vm282, %v457
        %467 = vrot.lane.b32.xlu0 %v277, 115
        %v468 = vpop.permute.xlu0 %467
        %469 = vrot.lane.b32.xlu0 %v278, 115
        %v470 = vpop.permute.xlu0 %469
        %471 = vrot.lane.b32.xlu0 %v279, 115
        %v472 = vpop.permute.xlu0 %471
        %vm473 = vcmask 941056
        %v474 = vsel %vm473, %v468, %v470
        %v475 = vsel %vm473, %v470, %v472
        %479 = vst [vmem:[#allocation2 + $0x138] sm:$0xff] %v474
        %480 = vst [vmem:[#allocation2 + $0x140] sm:$0xff] %v475
        %481 = vst.msk [vmem:[#allocation2 + $0x148] sm:$0xff] %vm282, %v472
        %482 = vrot.lane.b32.xlu0 %v277, 114
        %v483 = vpop.permute.xlu0 %482
        %484 = vrot.lane.b32.xlu0 %v278, 114
        %v485 = vpop.permute.xlu0 %484
        %486 = vrot.lane.b32.xlu0 %v279, 114
        %v487 = vpop.permute.xlu0 %486
        %vm488 = vcmask 932864
        %v489 = vsel %vm488, %v483, %v485
        %v490 = vsel %vm488, %v485, %v487
        %494 = vst [vmem:[#allocation2 + $0x150] sm:$0xff] %v489
        %495 = vst [vmem:[#allocation2 + $0x158] sm:$0xff] %v490
        %496 = vst.msk [vmem:[#allocation2 + $0x160] sm:$0xff] %vm282, %v487
        %497 = vrot.lane.b32.xlu0 %v277, 113
        %v498 = vpop.permute.xlu0 %497
        %499 = vrot.lane.b32.xlu0 %v278, 113
        %v500 = vpop.permute.xlu0 %499
        %501 = vrot.lane.b32.xlu0 %v279, 113
        %v502 = vpop.permute.xlu0 %501
        %vm503 = vcmask 924672
        %v504 = vsel %vm503, %v498, %v500
        %v505 = vsel %vm503, %v500, %v502
        %509 = vst [vmem:[#allocation2 + $0x168] sm:$0xff] %v504
        %510 = vst [vmem:[#allocation2 + $0x170] sm:$0xff] %v505
        %511 = vst.msk [vmem:[#allocation2 + $0x178] sm:$0xff] %vm282, %v502
        %512 = vrot.lane.b32.xlu0 %v277, 112
        %v513 = vpop.permute.xlu0 %512
        %514 = vrot.lane.b32.xlu0 %v278, 112
        %v515 = vpop.permute.xlu0 %514
        %516 = vrot.lane.b32.xlu0 %v279, 112
        %v517 = vpop.permute.xlu0 %516
        %vm518 = vcmask 916480
        %v519 = vsel %vm518, %v513, %v515
        %v520 = vsel %vm518, %v515, %v517
        %524 = vst [vmem:[#allocation2 + $0x180] sm:$0xff] %v519
        %525 = vst [vmem:[#allocation2 + $0x188] sm:$0xff] %v520
        %526 = vst.msk [vmem:[#allocation2 + $0x190] sm:$0xff] %vm282, %v517
        %527 = vrot.lane.b32.xlu0 %v277, 111
        %v528 = vpop.permute.xlu0 %527
        %529 = vrot.lane.b32.xlu0 %v278, 111
        %v530 = vpop.permute.xlu0 %529
        %531 = vrot.lane.b32.xlu0 %v279, 111
        %v532 = vpop.permute.xlu0 %531
        %vm533 = vcmask 908288
        %v534 = vsel %vm533, %v528, %v530
        %v535 = vsel %vm533, %v530, %v532
        %539 = vst [vmem:[#allocation2 + $0x198] sm:$0xff] %v534
        %540 = vst [vmem:[#allocation2 + $0x1a0] sm:$0xff] %v535
        %541 = vst.msk [vmem:[#allocation2 + $0x1a8] sm:$0xff] %vm282, %v532
        %542 = vrot.lane.b32.xlu0 %v277, 110
        %v543 = vpop.permute.xlu0 %542
        %544 = vrot.lane.b32.xlu0 %v278, 110
        %v545 = vpop.permute.xlu0 %544
        %546 = vrot.lane.b32.xlu0 %v279, 110
        %v547 = vpop.permute.xlu0 %546
        %vm548 = vcmask 900096
        %v549 = vsel %vm548, %v543, %v545
        %v550 = vsel %vm548, %v545, %v547
        %554 = vst [vmem:[#allocation2 + $0x1b0] sm:$0xff] %v549
        %555 = vst [vmem:[#allocation2 + $0x1b8] sm:$0xff] %v550
        %556 = vst.msk [vmem:[#allocation2 + $0x1c0] sm:$0xff] %vm282, %v547
        %557 = vrot.lane.b32.xlu0 %v277, 109
        %v558 = vpop.permute.xlu0 %557
        %559 = vrot.lane.b32.xlu0 %v278, 109
        %v560 = vpop.permute.xlu0 %559
        %561 = vrot.lane.b32.xlu0 %v279, 109
        %v562 = vpop.permute.xlu0 %561
        %vm563 = vcmask 891904
        %v564 = vsel %vm563, %v558, %v560
        %v565 = vsel %vm563, %v560, %v562
        %569 = vst [vmem:[#allocation2 + $0x1c8] sm:$0xff] %v564
        %570 = vst [vmem:[#allocation2 + $0x1d0] sm:$0xff] %v565
        %571 = vst.msk [vmem:[#allocation2 + $0x1d8] sm:$0xff] %vm282, %v562
        %572 = vrot.lane.b32.xlu0 %v277, 108
        %v573 = vpop.permute.xlu0 %572
        %574 = vrot.lane.b32.xlu0 %v278, 108
        %v575 = vpop.permute.xlu0 %574
        %576 = vrot.lane.b32.xlu0 %v279, 108
        %v577 = vpop.permute.xlu0 %576
        %vm578 = vcmask 883712
        %v579 = vsel %vm578, %v573, %v575
        %v580 = vsel %vm578, %v575, %v577
        %584 = vst [vmem:[#allocation2 + $0x1e0] sm:$0xff] %v579
        %585 = vst [vmem:[#allocation2 + $0x1e8] sm:$0xff] %v580
        %586 = vst.msk [vmem:[#allocation2 + $0x1f0] sm:$0xff] %vm282, %v577
        %587 = vrot.lane.b32.xlu0 %v277, 107
        %v588 = vpop.permute.xlu0 %587
        %589 = vrot.lane.b32.xlu0 %v278, 107
        %v590 = vpop.permute.xlu0 %589
        %591 = vrot.lane.b32.xlu0 %v279, 107
        %v592 = vpop.permute.xlu0 %591
        %vm593 = vcmask 875520
        %v594 = vsel %vm593, %v588, %v590
        %v595 = vsel %vm593, %v590, %v592
        %599 = vst [vmem:[#allocation2 + $0x1f8] sm:$0xff] %v594
        %600 = vst [vmem:[#allocation2 + $0x200] sm:$0xff] %v595
        %601 = vst.msk [vmem:[#allocation2 + $0x208] sm:$0xff] %vm282, %v592
        %602 = vrot.lane.b32.xlu0 %v277, 106
        %v603 = vpop.permute.xlu0 %602
        %604 = vrot.lane.b32.xlu0 %v278, 106
        %v605 = vpop.permute.xlu0 %604
        %606 = vrot.lane.b32.xlu0 %v279, 106
        %v607 = vpop.permute.xlu0 %606
        %vm608 = vcmask 867328
        %v609 = vsel %vm608, %v603, %v605
        %v610 = vsel %vm608, %v605, %v607
        %614 = vst [vmem:[#allocation2 + $0x210] sm:$0xff] %v609
        %615 = vst [vmem:[#allocation2 + $0x218] sm:$0xff] %v610
        %616 = vst.msk [vmem:[#allocation2 + $0x220] sm:$0xff] %vm282, %v607
        %617 = vrot.lane.b32.xlu0 %v277, 105
        %v618 = vpop.permute.xlu0 %617
        %619 = vrot.lane.b32.xlu0 %v278, 105
        %v620 = vpop.permute.xlu0 %619
        %621 = vrot.lane.b32.xlu0 %v279, 105
        %v622 = vpop.permute.xlu0 %621
        %vm623 = vcmask 859136
        %v624 = vsel %vm623, %v618, %v620
        %v625 = vsel %vm623, %v620, %v622
        %629 = vst [vmem:[#allocation2 + $0x228] sm:$0xff] %v624
        %630 = vst [vmem:[#allocation2 + $0x230] sm:$0xff] %v625
        %631 = vst.msk [vmem:[#allocation2 + $0x238] sm:$0xff] %vm282, %v622
        %632 = vrot.lane.b32.xlu0 %v277, 104
        %v633 = vpop.permute.xlu0 %632
        %634 = vrot.lane.b32.xlu0 %v278, 104
        %v635 = vpop.permute.xlu0 %634
        %636 = vrot.lane.b32.xlu0 %v279, 104
        %v637 = vpop.permute.xlu0 %636
        %vm638 = vcmask 850944
        %v639 = vsel %vm638, %v633, %v635
        %v640 = vsel %vm638, %v635, %v637
        %644 = vst [vmem:[#allocation2 + $0x240] sm:$0xff] %v639
        %645 = vst [vmem:[#allocation2 + $0x248] sm:$0xff] %v640
        %646 = vst.msk [vmem:[#allocation2 + $0x250] sm:$0xff] %vm282, %v637
        %647 = vrot.lane.b32.xlu0 %v277, 103
        %v648 = vpop.permute.xlu0 %647
        %649 = vrot.lane.b32.xlu0 %v278, 103
        %v650 = vpop.permute.xlu0 %649
        %651 = vrot.lane.b32.xlu0 %v279, 103
        %v652 = vpop.permute.xlu0 %651
        %vm653 = vcmask 842752
        %v654 = vsel %vm653, %v648, %v650
        %v655 = vsel %vm653, %v650, %v652
        %659 = vst [vmem:[#allocation2 + $0x258] sm:$0xff] %v654
        %660 = vst [vmem:[#allocation2 + $0x260] sm:$0xff] %v655
        %661 = vst.msk [vmem:[#allocation2 + $0x268] sm:$0xff] %vm282, %v652
        %662 = vrot.lane.b32.xlu0 %v277, 102
        %v663 = vpop.permute.xlu0 %662
        %664 = vrot.lane.b32.xlu0 %v278, 102
        %v665 = vpop.permute.xlu0 %664
        %666 = vrot.lane.b32.xlu0 %v279, 102
        %v667 = vpop.permute.xlu0 %666
        %vm668 = vcmask 834560
        %v669 = vsel %vm668, %v663, %v665
        %v670 = vsel %vm668, %v665, %v667
        %674 = vst [vmem:[#allocation2 + $0x270] sm:$0xff] %v669
        %675 = vst [vmem:[#allocation2 + $0x278] sm:$0xff] %v670
        %676 = vst.msk [vmem:[#allocation2 + $0x280] sm:$0xff] %vm282, %v667
        %677 = vrot.lane.b32.xlu0 %v277, 101
        %v678 = vpop.permute.xlu0 %677
        %679 = vrot.lane.b32.xlu0 %v278, 101
        %v680 = vpop.permute.xlu0 %679
        %681 = vrot.lane.b32.xlu0 %v279, 101
        %v682 = vpop.permute.xlu0 %681
        %vm683 = vcmask 826368
        %v684 = vsel %vm683, %v678, %v680
        %v685 = vsel %vm683, %v680, %v682
        %689 = vst [vmem:[#allocation2 + $0x288] sm:$0xff] %v684
        %690 = vst [vmem:[#allocation2 + $0x290] sm:$0xff] %v685
        %691 = vst.msk [vmem:[#allocation2 + $0x298] sm:$0xff] %vm282, %v682
        %692 = vrot.lane.b32.xlu0 %v277, 100
        %v693 = vpop.permute.xlu0 %692
        %694 = vrot.lane.b32.xlu0 %v278, 100
        %v695 = vpop.permute.xlu0 %694
        %696 = vrot.lane.b32.xlu0 %v279, 100
        %v697 = vpop.permute.xlu0 %696
        %vm698 = vcmask 818176
        %v699 = vsel %vm698, %v693, %v695
        %v700 = vsel %vm698, %v695, %v697
        %704 = vst [vmem:[#allocation2 + $0x2a0] sm:$0xff] %v699
        %705 = vst [vmem:[#allocation2 + $0x2a8] sm:$0xff] %v700
        %706 = vst.msk [vmem:[#allocation2 + $0x2b0] sm:$0xff] %vm282, %v697
        %707 = vrot.lane.b32.xlu0 %v277, 99
        %v708 = vpop.permute.xlu0 %707
        %709 = vrot.lane.b32.xlu0 %v278, 99
        %v710 = vpop.permute.xlu0 %709
        %711 = vrot.lane.b32.xlu0 %v279, 99
        %v712 = vpop.permute.xlu0 %711
        %vm713 = vcmask 809984
        %v714 = vsel %vm713, %v708, %v710
        %v715 = vsel %vm713, %v710, %v712
        %719 = vst [vmem:[#allocation2 + $0x2b8] sm:$0xff] %v714
        %720 = vst [vmem:[#allocation2 + $0x2c0] sm:$0xff] %v715
        %721 = vst.msk [vmem:[#allocation2 + $0x2c8] sm:$0xff] %vm282, %v712
        %722 = vrot.lane.b32.xlu0 %v277, 98
        %v723 = vpop.permute.xlu0 %722
        %724 = vrot.lane.b32.xlu0 %v278, 98
        %v725 = vpop.permute.xlu0 %724
        %726 = vrot.lane.b32.xlu0 %v279, 98
        %v727 = vpop.permute.xlu0 %726
        %vm728 = vcmask 801792
        %v729 = vsel %vm728, %v723, %v725
        %v730 = vsel %vm728, %v725, %v727
        %734 = vst [vmem:[#allocation2 + $0x2d0] sm:$0xff] %v729
        %735 = vst [vmem:[#allocation2 + $0x2d8] sm:$0xff] %v730
        %736 = vst.msk [vmem:[#allocation2 + $0x2e0] sm:$0xff] %vm282, %v727
        %737 = vrot.lane.b32.xlu0 %v277, 97
        %v738 = vpop.permute.xlu0 %737
        %739 = vrot.lane.b32.xlu0 %v278, 97
        %v740 = vpop.permute.xlu0 %739
        %741 = vrot.lane.b32.xlu0 %v279, 97
        %v742 = vpop.permute.xlu0 %741
        %vm743 = vcmask 793600
        %v744 = vsel %vm743, %v738, %v740
        %v745 = vsel %vm743, %v740, %v742
        %749 = vst [vmem:[#allocation2 + $0x2e8] sm:$0xff] %v744
        %750 = vst [vmem:[#allocation2 + $0x2f0] sm:$0xff] %v745
        %751 = vst.msk [vmem:[#allocation2 + $0x2f8] sm:$0xff] %vm282, %v742
        %752 = vrot.lane.b32.xlu0 %v277, 96
        %v753 = vpop.permute.xlu0 %752
        %754 = vrot.lane.b32.xlu0 %v278, 96
        %v755 = vpop.permute.xlu0 %754
        %756 = vrot.lane.b32.xlu0 %v279, 96
        %v757 = vpop.permute.xlu0 %756
        %vm758 = vcmask 785408
        %v759 = vsel %vm758, %v753, %v755
        %v760 = vsel %vm758, %v755, %v757
        %764 = vst [vmem:[#allocation2 + $0x300] sm:$0xff] %v759
        %765 = vst [vmem:[#allocation2 + $0x308] sm:$0xff] %v760
        %766 = vst.msk [vmem:[#allocation2 + $0x310] sm:$0xff] %vm282, %v757
        %767 = vrot.lane.b32.xlu0 %v277, 95
        %v768 = vpop.permute.xlu0 %767
        %769 = vrot.lane.b32.xlu0 %v278, 95
        %v770 = vpop.permute.xlu0 %769
        %771 = vrot.lane.b32.xlu0 %v279, 95
        %v772 = vpop.permute.xlu0 %771
        %vm773 = vcmask 777216
        %v774 = vsel %vm773, %v768, %v770
        %v775 = vsel %vm773, %v770, %v772
        %779 = vst [vmem:[#allocation2 + $0x318] sm:$0xff] %v774
        %780 = vst [vmem:[#allocation2 + $0x320] sm:$0xff] %v775
        %781 = vst.msk [vmem:[#allocation2 + $0x328] sm:$0xff] %vm282, %v772
        %782 = vrot.lane.b32.xlu0 %v277, 94
        %v783 = vpop.permute.xlu0 %782
        %784 = vrot.lane.b32.xlu0 %v278, 94
        %v785 = vpop.permute.xlu0 %784
        %786 = vrot.lane.b32.xlu0 %v279, 94
        %v787 = vpop.permute.xlu0 %786
        %vm788 = vcmask 769024
        %v789 = vsel %vm788, %v783, %v785
        %v790 = vsel %vm788, %v785, %v787
        %794 = vst [vmem:[#allocation2 + $0x330] sm:$0xff] %v789
        %795 = vst [vmem:[#allocation2 + $0x338] sm:$0xff] %v790
        %796 = vst.msk [vmem:[#allocation2 + $0x340] sm:$0xff] %vm282, %v787
        %797 = vrot.lane.b32.xlu0 %v277, 93
        %v798 = vpop.permute.xlu0 %797
        %799 = vrot.lane.b32.xlu0 %v278, 93
        %v800 = vpop.permute.xlu0 %799
        %801 = vrot.lane.b32.xlu0 %v279, 93
        %v802 = vpop.permute.xlu0 %801
        %vm803 = vcmask 760832
        %v804 = vsel %vm803, %v798, %v800
        %v805 = vsel %vm803, %v800, %v802
        %809 = vst [vmem:[#allocation2 + $0x348] sm:$0xff] %v804
        %810 = vst [vmem:[#allocation2 + $0x350] sm:$0xff] %v805
        %811 = vst.msk [vmem:[#allocation2 + $0x358] sm:$0xff] %vm282, %v802
        %812 = vrot.lane.b32.xlu0 %v277, 92
        %v813 = vpop.permute.xlu0 %812
        %814 = vrot.lane.b32.xlu0 %v278, 92
        %v815 = vpop.permute.xlu0 %814
        %816 = vrot.lane.b32.xlu0 %v279, 92
        %v817 = vpop.permute.xlu0 %816
        %vm818 = vcmask 752640
        %v819 = vsel %vm818, %v813, %v815
        %v820 = vsel %vm818, %v815, %v817
        %824 = vst [vmem:[#allocation2 + $0x360] sm:$0xff] %v819
        %825 = vst [vmem:[#allocation2 + $0x368] sm:$0xff] %v820
        %826 = vst.msk [vmem:[#allocation2 + $0x370] sm:$0xff] %vm282, %v817
        %827 = vrot.lane.b32.xlu0 %v277, 91
        %v828 = vpop.permute.xlu0 %827
        %829 = vrot.lane.b32.xlu0 %v278, 91
        %v830 = vpop.permute.xlu0 %829
        %831 = vrot.lane.b32.xlu0 %v279, 91
        %v832 = vpop.permute.xlu0 %831
        %vm833 = vcmask 744448
        %v834 = vsel %vm833, %v828, %v830
        %v835 = vsel %vm833, %v830, %v832
        %839 = vst [vmem:[#allocation2 + $0x378] sm:$0xff] %v834
        %840 = vst [vmem:[#allocation2 + $0x380] sm:$0xff] %v835
        %841 = vst.msk [vmem:[#allocation2 + $0x388] sm:$0xff] %vm282, %v832
        %842 = vrot.lane.b32.xlu0 %v277, 90
        %v843 = vpop.permute.xlu0 %842
        %844 = vrot.lane.b32.xlu0 %v278, 90
        %v845 = vpop.permute.xlu0 %844
        %846 = vrot.lane.b32.xlu0 %v279, 90
        %v847 = vpop.permute.xlu0 %846
        %vm848 = vcmask 736256
        %v849 = vsel %vm848, %v843, %v845
        %v850 = vsel %vm848, %v845, %v847
        %854 = vst [vmem:[#allocation2 + $0x390] sm:$0xff] %v849
        %855 = vst [vmem:[#allocation2 + $0x398] sm:$0xff] %v850
        %856 = vst.msk [vmem:[#allocation2 + $0x3a0] sm:$0xff] %vm282, %v847
        %v857 = vld [vmem:[#allocation8] sm:$0xff]
        %v858 = vld [vmem:[#allocation8 + $0x8] sm:$0xff]
        %v859 = vld [vmem:[#allocation8 + $0x10] sm:$0xff]
        %v860 = vld [vmem:[#allocation8 + $0x18] sm:$0xff]
        %v861 = vld [vmem:[#allocation8 + $0x20] sm:$0xff]
        %v862 = vld [vmem:[#allocation8 + $0x28] sm:$0xff]
        %v863 = vld [vmem:[#allocation2] sm:$0xff]
        %v864 = vld [vmem:[#allocation2 + $0x8] sm:$0xff]
        %v865 = vld [vmem:[#allocation2 + $0x10] sm:$0xff]
        %v866 = vld [vmem:[#allocation2 + $0x18] sm:$0xff]
        %v867 = vld [vmem:[#allocation2 + $0x20] sm:$0xff]
        %v868 = vld [vmem:[#allocation2 + $0x28] sm:$0xff]
        %v869 = vld [vmem:[#allocation2 + $0x30] sm:$0xff]
        %v870 = vld [vmem:[#allocation2 + $0x38] sm:$0xff]
        %v871 = vld [vmem:[#allocation2 + $0x40] sm:$0xff]
        %v872 = vld [vmem:[#allocation2 + $0x48] sm:$0xff]
        %v873 = vld [vmem:[#allocation2 + $0x50] sm:$0xff]
        %v874 = vld [vmem:[#allocation2 + $0x58] sm:$0xff]
        %v875 = vld [vmem:[#allocation2 + $0x60] sm:$0xff]
        %v876 = vld [vmem:[#allocation2 + $0x68] sm:$0xff]
        %v877 = vld [vmem:[#allocation2 + $0x70] sm:$0xff]
        %v878 = vld [vmem:[#allocation2 + $0x78] sm:$0xff]
        %v879 = vld [vmem:[#allocation2 + $0x80] sm:$0xff]
        %v880 = vld [vmem:[#allocation2 + $0x88] sm:$0xff]
        %v881 = vld [vmem:[#allocation2 + $0x90] sm:$0xff]
        %v882 = vld [vmem:[#allocation2 + $0x98] sm:$0xff]
        %v883 = vld [vmem:[#allocation2 + $0xa0] sm:$0xff]
        %v884 = vld [vmem:[#allocation2 + $0xa8] sm:$0xff]
        %v885 = vld [vmem:[#allocation2 + $0xb0] sm:$0xff]
        %v886 = vld [vmem:[#allocation2 + $0xb8] sm:$0xff]
        %v887 = vld [vmem:[#allocation2 + $0xc0] sm:$0xff]
        %v888 = vld [vmem:[#allocation2 + $0xc8] sm:$0xff]
        %v889 = vld [vmem:[#allocation2 + $0xd0] sm:$0xff]
        %v890 = vld [vmem:[#allocation2 + $0xd8] sm:$0xff]
        %v891 = vld [vmem:[#allocation2 + $0xe0] sm:$0xff]
        %v892 = vld [vmem:[#allocation2 + $0xe8] sm:$0xff]
        %v893 = vld [vmem:[#allocation2 + $0xf0] sm:$0xff]
        %v894 = vld [vmem:[#allocation2 + $0xf8] sm:$0xff]
        %v895 = vld [vmem:[#allocation2 + $0x100] sm:$0xff]
        %v896 = vld [vmem:[#allocation2 + $0x108] sm:$0xff]
        %v897 = vld [vmem:[#allocation2 + $0x110] sm:$0xff]
        %v898 = vld [vmem:[#allocation2 + $0x118] sm:$0xff]
        %v899 = vld [vmem:[#allocation2 + $0x120] sm:$0xff]
        %v900 = vld [vmem:[#allocation2 + $0x128] sm:$0xff]
        %v901 = vld [vmem:[#allocation2 + $0x130] sm:$0xff]
        %v902 = vld [vmem:[#allocation2 + $0x138] sm:$0xff]
        %v903 = vld [vmem:[#allocation2 + $0x140] sm:$0xff]
        %v904 = vld [vmem:[#allocation2 + $0x148] sm:$0xff]
        %v905 = vld [vmem:[#allocation2 + $0x150] sm:$0xff]
        %v906 = vld [vmem:[#allocation2 + $0x158] sm:$0xff]
        %v907 = vld [vmem:[#allocation2 + $0x160] sm:$0xff]
        %v908 = vld [vmem:[#allocation2 + $0x168] sm:$0xff]
        %v909 = vld [vmem:[#allocation2 + $0x170] sm:$0xff]
        %v910 = vld [vmem:[#allocation2 + $0x178] sm:$0xff]
        %v911 = vld [vmem:[#allocation2 + $0x180] sm:$0xff]
        %v912 = vld [vmem:[#allocation2 + $0x188] sm:$0xff]
        %v913 = vld [vmem:[#allocation2 + $0x190] sm:$0xff]
        %v914 = vld [vmem:[#allocation2 + $0x198] sm:$0xff]
        %v915 = vld [vmem:[#allocation2 + $0x1a0] sm:$0xff]
        %v916 = vld [vmem:[#allocation2 + $0x1a8] sm:$0xff]
        %v917 = vld [vmem:[#allocation2 + $0x1b0] sm:$0xff]
        %v918 = vld [vmem:[#allocation2 + $0x1b8] sm:$0xff]
        %v919 = vld [vmem:[#allocation2 + $0x1c0] sm:$0xff]
        %v920 = vld [vmem:[#allocation2 + $0x1c8] sm:$0xff]
        %v921 = vld [vmem:[#allocation2 + $0x1d0] sm:$0xff]
        %v922 = vld [vmem:[#allocation2 + $0x1d8] sm:$0xff]
        %v923 = vld [vmem:[#allocation2 + $0x1e0] sm:$0xff]
        %v924 = vld [vmem:[#allocation2 + $0x1e8] sm:$0xff]
        %v925 = vld [vmem:[#allocation2 + $0x1f0] sm:$0xff]
        %v926 = vld [vmem:[#allocation2 + $0x1f8] sm:$0xff]
        %v927 = vld [vmem:[#allocation2 + $0x200] sm:$0xff]
        %v928 = vld [vmem:[#allocation2 + $0x208] sm:$0xff]
        %v929 = vld [vmem:[#allocation2 + $0x210] sm:$0xff]
        %v930 = vld [vmem:[#allocation2 + $0x218] sm:$0xff]
        %v931 = vld [vmem:[#allocation2 + $0x220] sm:$0xff]
        %v932 = vld [vmem:[#allocation2 + $0x228] sm:$0xff]
        %v933 = vld [vmem:[#allocation2 + $0x230] sm:$0xff]
        %v934 = vld [vmem:[#allocation2 + $0x238] sm:$0xff]
        %v935 = vld [vmem:[#allocation2 + $0x240] sm:$0xff]
        %v936 = vld [vmem:[#allocation2 + $0x248] sm:$0xff]
        %v937 = vld [vmem:[#allocation2 + $0x250] sm:$0xff]
        %v938 = vld [vmem:[#allocation2 + $0x258] sm:$0xff]
        %v939 = vld [vmem:[#allocation2 + $0x260] sm:$0xff]
        %v940 = vld [vmem:[#allocation2 + $0x268] sm:$0xff]
        %v941 = vld [vmem:[#allocation2 + $0x270] sm:$0xff]
        %v942 = vld [vmem:[#allocation2 + $0x278] sm:$0xff]
        %v943 = vld [vmem:[#allocation2 + $0x280] sm:$0xff]
        %v944 = vld [vmem:[#allocation2 + $0x288] sm:$0xff]
        %v945 = vld [vmem:[#allocation2 + $0x290] sm:$0xff]
        %v946 = vld [vmem:[#allocation2 + $0x298] sm:$0xff]
        %v947 = vld [vmem:[#allocation2 + $0x2a0] sm:$0xff]
        %v948 = vld [vmem:[#allocation2 + $0x2a8] sm:$0xff]
        %v949 = vld [vmem:[#allocation2 + $0x2b0] sm:$0xff]
        %v950 = vld [vmem:[#allocation2 + $0x2b8] sm:$0xff]
        %v951 = vld [vmem:[#allocation2 + $0x2c0] sm:$0xff]
        %v952 = vld [vmem:[#allocation2 + $0x2c8] sm:$0xff]
        %v953 = vld [vmem:[#allocation2 + $0x2d0] sm:$0xff]
        %v954 = vld [vmem:[#allocation2 + $0x2d8] sm:$0xff]
        %v955 = vld [vmem:[#allocation2 + $0x2e0] sm:$0xff]
        %v956 = vld [vmem:[#allocation2 + $0x2e8] sm:$0xff]
        %v957 = vld [vmem:[#allocation2 + $0x2f0] sm:$0xff]
        %v958 = vld [vmem:[#allocation2 + $0x2f8] sm:$0xff]
        %v959 = vld [vmem:[#allocation2 + $0x300] sm:$0xff]
        %v960 = vld [vmem:[#allocation2 + $0x308] sm:$0xff]
        %v961 = vld [vmem:[#allocation2 + $0x310] sm:$0xff]
        %v962 = vld [vmem:[#allocation2 + $0x318] sm:$0xff]
        %v963 = vld [vmem:[#allocation2 + $0x320] sm:$0xff]
        %v964 = vld [vmem:[#allocation2 + $0x328] sm:$0xff]
        %v965 = vld [vmem:[#allocation2 + $0x330] sm:$0xff]
        %v966 = vld [vmem:[#allocation2 + $0x338] sm:$0xff]
        %v967 = vld [vmem:[#allocation2 + $0x340] sm:$0xff]
        %v968 = vld [vmem:[#allocation2 + $0x348] sm:$0xff]
        %v969 = vld [vmem:[#allocation2 + $0x350] sm:$0xff]
        %v970 = vld [vmem:[#allocation2 + $0x358] sm:$0xff]
        %v971 = vld [vmem:[#allocation2 + $0x360] sm:$0xff]
        %v972 = vld [vmem:[#allocation2 + $0x368] sm:$0xff]
        %v973 = vld [vmem:[#allocation2 + $0x370] sm:$0xff]
        %v974 = vld [vmem:[#allocation2 + $0x378] sm:$0xff]
        %v975 = vld [vmem:[#allocation2 + $0x380] sm:$0xff]
        %v976 = vld [vmem:[#allocation2 + $0x388] sm:$0xff]
        %v977 = vld [vmem:[#allocation2 + $0x390] sm:$0xff]
        %v978 = vld [vmem:[#allocation2 + $0x398] sm:$0xff]
        %v979 = vld [vmem:[#allocation2 + $0x3a0] sm:$0xff]
        %vm980 = vcmask 457728
        %v982 = vsel %vm980, %v859, 0
        %v985 = vsel %vm980, %v862, 0
        %987 = vmatprep.subr.mxu0 %v864
        %988 = vmatpush1.msra.mxu0 %v863
        %989 = vmatprep.subr.mxu0 %v867
        %990 = vmatpush1.msra.mxu0 %v866
        %991 = vmatprep.subr.mxu0 %v870
        %992 = vmatpush1.msra.mxu0 %v869
        %993 = vmatprep.subr.mxu0 %v873
        %994 = vmatpush1.msra.mxu0 %v872
        %995 = vmatprep.subr.mxu0 %v876
        %996 = vmatpush1.msra.mxu0 %v875
        %997 = vmatprep.subr.mxu0 %v879
        %998 = vmatpush1.msra.mxu0 %v878
        %999 = vmatprep.subr.mxu0 %v882
        %1000 = vmatpush1.msra.mxu0 %v881
        %1001 = vmatprep.subr.mxu0 %v885
        %1002 = vmatpush1.msra.mxu0 %v884
        %1003 = vmatprep.subr.mxu0 %v888
        %1004 = vmatpush1.msra.mxu0 %v887
        %1005 = vmatprep.subr.mxu0 %v891
        %1006 = vmatpush1.msra.mxu0 %v890
        %1007 = vmatprep.subr.mxu0 %v894
        %1008 = vmatpush1.msra.mxu0 %v893
        %1009 = vmatprep.subr.mxu0 %v897
        %1010 = vmatpush1.msra.mxu0 %v896
        %1011 = vmatprep.subr.mxu0 %v900
        %1012 = vmatpush1.msra.mxu0 %v899
        %1013 = vmatprep.subr.mxu0 %v903
        %1014 = vmatpush1.msra.mxu0 %v902
        %1015 = vmatprep.subr.mxu0 %v906
        %1016 = vmatpush1.msra.mxu0 %v905
        %1017 = vmatprep.subr.mxu0 %v909
        %1018 = vmatpush1.msra.mxu0 %v908
        %1019 = vmatprep.subr.mxu0 %v912
        %1020 = vmatpush1.msra.mxu0 %v911
        %1021 = vmatprep.subr.mxu0 %v915
        %1022 = vmatpush1.msra.mxu0 %v914
        %1023 = vmatprep.subr.mxu0 %v918
        %1024 = vmatpush1.msra.mxu0 %v917
        %1025 = vmatprep.subr.mxu0 %v921
        %1026 = vmatpush1.msra.mxu0 %v920
        %1027 = vmatprep.subr.mxu0 %v924
        %1028 = vmatpush1.msra.mxu0 %v923
        %1029 = vmatprep.subr.mxu0 %v927
        %1030 = vmatpush1.msra.mxu0 %v926
        %1031 = vmatprep.subr.mxu0 %v930
        %1032 = vmatpush1.msra.mxu0 %v929
        %1033 = vmatprep.subr.mxu0 %v933
        %1034 = vmatpush1.msra.mxu0 %v932
        %1035 = vmatprep.subr.mxu0 %v936
        %1036 = vmatpush1.msra.mxu0 %v935
        %1037 = vmatprep.subr.mxu0 %v939
        %1038 = vmatpush1.msra.mxu0 %v938
        %1039 = vmatprep.subr.mxu0 %v942
        %1040 = vmatpush1.msra.mxu0 %v941
        %1041 = vmatprep.subr.mxu0 %v945
        %1042 = vmatpush1.msra.mxu0 %v944
        %1043 = vmatprep.subr.mxu0 %v948
        %1044 = vmatpush1.msra.mxu0 %v947
        %1045 = vmatprep.subr.mxu0 %v951
        %1046 = vmatpush1.msra.mxu0 %v950
        %1047 = vmatprep.subr.mxu0 %v954
        %1048 = vmatpush1.msra.mxu0 %v953
        %1049 = vmatprep.subr.mxu0 %v957
        %1050 = vmatpush1.msra.mxu0 %v956
        %1051 = vmatprep.mubr.f32.mxu0 %v858
        %1052 = vmatmul.mubr.f32.gmra.mrb[0].mxu0 %v857
        %v1053 = vpop.f32.mrb[0].mxu0
        %v1054 = vadd.f32 0.0, %v1053
        %v1055 = vpop.f32.mrb[0].mxu0
        %v1056 = vadd.f32 0.0, %v1055
        %1057 = vmatprep.mubr.f32.mxu0 %v861
        %1058 = vmatmul.mubr.f32.gmra.mrb[0].mxu0 %v860
        %v1059 = vpop.f32.mrb[0].mxu0
        %v1060 = vadd.f32 0.0, %v1059
        %v1061 = vpop.f32.mrb[0].mxu0
        %v1062 = vadd.f32 0.0, %v1061
        %1063 = vdwg.mxu0
        %1064 = vmatprep.subr.mxu0 %v960
        %1065 = vmatpush1.msra.mxu0 %v959
        %1066 = vmatprep.subr.mxu0 %v963
        %1067 = vmatpush1.msra.mxu0 %v962
        %1068 = vmatprep.subr.mxu0 %v966
        %1069 = vmatpush1.msra.mxu0 %v965
        %1070 = vmatprep.subr.mxu0 %v969
        %1071 = vmatpush1.msra.mxu0 %v968
        %1072 = vmatprep.subr.mxu0 %v972
        %1073 = vmatpush1.msra.mxu0 %v971
        %1074 = vmatprep.subr.mxu0 %v975
        %1075 = vmatpush1.msra.mxu0 %v974
        %1076 = vmatprep.subr.mxu0 %v978
        %1077 = vmatpush1.msra.mxu0 %v977
        %1078 = vmatprep.subr.mxu0 0.0
        %1079 = vmatpush1.msra.mxu0 0.0
        %1080 = vmatprep.subr.mxu0 0.0
        %1081 = vmatpush1.msra.mxu0 0.0
        %1082 = vmatprep.subr.mxu0 0.0
        %1083 = vmatpush1.msra.mxu0 0.0
        %1084 = vmatprep.subr.mxu0 0.0
        %1085 = vmatpush1.msra.mxu0 0.0
        %1086 = vmatprep.subr.mxu0 0.0
        %1087 = vmatpush1.msra.mxu0 0.0
        %1088 = vmatprep.subr.mxu0 0.0
        %1089 = vmatpush1.msra.mxu0 0.0
        %1090 = vmatprep.subr.mxu0 0.0
        %1091 = vmatpush1.msra.mxu0 0.0
        %1092 = vmatprep.subr.mxu0 0.0
        %1093 = vmatpush1.msra.mxu0 0.0
        %1094 = vmatprep.subr.mxu0 0.0
        %1095 = vmatpush1.msra.mxu0 0.0
        %1096 = vmatprep.subr.mxu0 0.0
        %1097 = vmatpush1.msra.mxu0 0.0
        %1098 = vmatprep.subr.mxu0 0.0
        %1099 = vmatpush1.msra.mxu0 0.0
        %1100 = vmatprep.subr.mxu0 0.0
        %1101 = vmatpush1.msra.mxu0 0.0
        %1102 = vmatprep.subr.mxu0 0.0
        %1103 = vmatpush1.msra.mxu0 0.0
        %1104 = vmatprep.subr.mxu0 0.0
        %1105 = vmatpush1.msra.mxu0 0.0
        %1106 = vmatprep.subr.mxu0 0.0
        %1107 = vmatpush1.msra.mxu0 0.0
        %1108 = vmatprep.subr.mxu0 0.0
        %1109 = vmatpush1.msra.mxu0 0.0
        %1110 = vmatprep.subr.mxu0 0.0
        %1111 = vmatpush1.msra.mxu0 0.0
        %1112 = vmatprep.subr.mxu0 0.0
        %1113 = vmatpush1.msra.mxu0 0.0
        %1114 = vmatprep.subr.mxu0 0.0
        %1115 = vmatpush1.msra.mxu0 0.0
        %1116 = vmatprep.subr.mxu0 0.0
        %1117 = vmatpush1.msra.mxu0 0.0
        %1118 = vmatprep.subr.mxu0 0.0
        %1119 = vmatpush1.msra.mxu0 0.0
        %1120 = vmatprep.subr.mxu0 0.0
        %1121 = vmatpush1.msra.mxu0 0.0
        %1122 = vmatprep.subr.mxu0 0.0
        %1123 = vmatpush1.msra.mxu0 0.0
        %1124 = vmatprep.subr.mxu0 0.0
        %1125 = vmatpush1.msra.mxu0 0.0
        %1126 = vmatprep.subr.mxu0 0.0
        %1127 = vmatpush1.msra.mxu0 0.0
        %1128 = vmatprep.mubr.f32.mxu0 0.0
        %1129 = vmatmul.mubr.f32.gmra.mrb[0].mxu0 %v982
        %v1130 = vpop.f32.mrb[0].mxu0
        %v1131 = vadd.f32 %v1054, %v1130
        %v1132 = vpop.f32.mrb[0].mxu0
        %v1133 = vadd.f32 %v1056, %v1132
        %1134 = vmatprep.mubr.f32.mxu0 0.0
        %1135 = vmatmul.mubr.f32.gmra.mrb[0].mxu0 %v985
        %v1136 = vpop.f32.mrb[0].mxu0
        %v1137 = vadd.f32 %v1060, %v1136
        %v1138 = vpop.f32.mrb[0].mxu0
        %v1139 = vadd.f32 %v1062, %v1138
        %1140 = vdwg.mxu0
        %1141 = vmatprep.subr.mxu0 0.0
        %1142 = vmatpush1.msra.mxu0 %v865
        %1143 = vmatprep.subr.mxu0 0.0
        %1144 = vmatpush1.msra.mxu0 %v868
        %1145 = vmatprep.subr.mxu0 0.0
        %1146 = vmatpush1.msra.mxu0 %v871
        %1147 = vmatprep.subr.mxu0 0.0
        %1148 = vmatpush1.msra.mxu0 %v874
        %1149 = vmatprep.subr.mxu0 0.0
        %1150 = vmatpush1.msra.mxu0 %v877
        %1151 = vmatprep.subr.mxu0 0.0
        %1152 = vmatpush1.msra.mxu0 %v880
        %1153 = vmatprep.subr.mxu0 0.0
        %1154 = vmatpush1.msra.mxu0 %v883
        %1155 = vmatprep.subr.mxu0 0.0
        %1156 = vmatpush1.msra.mxu0 %v886
        %1157 = vmatprep.subr.mxu0 0.0
        %1158 = vmatpush1.msra.mxu0 %v889
        %1159 = vmatprep.subr.mxu0 0.0
        %1160 = vmatpush1.msra.mxu0 %v892
        %1161 = vmatprep.subr.mxu0 0.0
        %1162 = vmatpush1.msra.mxu0 %v895
        %1163 = vmatprep.subr.mxu0 0.0
        %1164 = vmatpush1.msra.mxu0 %v898
        %1165 = vmatprep.subr.mxu0 0.0
        %1166 = vmatpush1.msra.mxu0 %v901
        %1167 = vmatprep.subr.mxu0 0.0
        %1168 = vmatpush1.msra.mxu0 %v904
        %1169 = vmatprep.subr.mxu0 0.0
        %1170 = vmatpush1.msra.mxu0 %v907
        %1171 = vmatprep.subr.mxu0 0.0
        %1172 = vmatpush1.msra.mxu0 %v910
        %1173 = vmatprep.subr.mxu0 0.0
        %1174 = vmatpush1.msra.mxu0 %v913
        %1175 = vmatprep.subr.mxu0 0.0
        %1176 = vmatpush1.msra.mxu0 %v916
        %1177 = vmatprep.subr.mxu0 0.0
        %1178 = vmatpush1.msra.mxu0 %v919
        %1179 = vmatprep.subr.mxu0 0.0
        %1180 = vmatpush1.msra.mxu0 %v922
        %1181 = vmatprep.subr.mxu0 0.0
        %1182 = vmatpush1.msra.mxu0 %v925
        %1183 = vmatprep.subr.mxu0 0.0
        %1184 = vmatpush1.msra.mxu0 %v928
        %1185 = vmatprep.subr.mxu0 0.0
        %1186 = vmatpush1.msra.mxu0 %v931
        %1187 = vmatprep.subr.mxu0 0.0
        %1188 = vmatpush1.msra.mxu0 %v934
        %1189 = vmatprep.subr.mxu0 0.0
        %1190 = vmatpush1.msra.mxu0 %v937
        %1191 = vmatprep.subr.mxu0 0.0
        %1192 = vmatpush1.msra.mxu0 %v940
        %1193 = vmatprep.subr.mxu0 0.0
        %1194 = vmatpush1.msra.mxu0 %v943
        %1195 = vmatprep.subr.mxu0 0.0
        %1196 = vmatpush1.msra.mxu0 %v946
        %1197 = vmatprep.subr.mxu0 0.0
        %1198 = vmatpush1.msra.mxu0 %v949
        %1199 = vmatprep.subr.mxu0 0.0
        %1200 = vmatpush1.msra.mxu0 %v952
        %1201 = vmatprep.subr.mxu0 0.0
        %1202 = vmatpush1.msra.mxu0 %v955
        %1203 = vmatprep.subr.mxu0 0.0
        %1204 = vmatpush1.msra.mxu0 %v958
        %1205 = vmatprep.mubr.f32.mxu0 %v858
        %1206 = vmatmul.mubr.f32.gmra.mrb[0].mxu0 %v857
        %v1207 = vpop.f32.mrb[0].mxu0
        %v1208 = vadd.f32 0.0, %v1207
        %v1209 = vpop.f32.mrb[0].mxu0
        %1210 = vmatprep.mubr.f32.mxu0 %v861
        %1211 = vmatmul.mubr.f32.gmra.mrb[0].mxu0 %v860
        %v1212 = vpop.f32.mrb[0].mxu0
        %v1213 = vadd.f32 0.0, %v1212
        %v1214 = vpop.f32.mrb[0].mxu0
        %1215 = vdwg.mxu0
        %1216 = vmatprep.subr.mxu0 0.0
        %1217 = vmatpush1.msra.mxu0 %v961
        %1218 = vmatprep.subr.mxu0 0.0
        %1219 = vmatpush1.msra.mxu0 %v964
        %1220 = vmatprep.subr.mxu0 0.0
        %1221 = vmatpush1.msra.mxu0 %v967
        %1222 = vmatprep.subr.mxu0 0.0
        %1223 = vmatpush1.msra.mxu0 %v970
        %1224 = vmatprep.subr.mxu0 0.0
        %1225 = vmatpush1.msra.mxu0 %v973
        %1226 = vmatprep.subr.mxu0 0.0
        %1227 = vmatpush1.msra.mxu0 %v976
        %1228 = vmatprep.subr.mxu0 0.0
        %1229 = vmatpush1.msra.mxu0 %v979
        %1230 = vmatprep.subr.mxu0 0.0
        %1231 = vmatpush1.msra.mxu0 0.0
        %1232 = vmatprep.subr.mxu0 0.0
        %1233 = vmatpush1.msra.mxu0 0.0
        %1234 = vmatprep.subr.mxu0 0.0
        %1235 = vmatpush1.msra.mxu0 0.0
        %1236 = vmatprep.subr.mxu0 0.0
        %1237 = vmatpush1.msra.mxu0 0.0
        %1238 = vmatprep.subr.mxu0 0.0
        %1239 = vmatpush1.msra.mxu0 0.0
        %1240 = vmatprep.subr.mxu0 0.0
        %1241 = vmatpush1.msra.mxu0 0.0
        %1242 = vmatprep.subr.mxu0 0.0
        %1243 = vmatpush1.msra.mxu0 0.0
        %1244 = vmatprep.subr.mxu0 0.0
        %1245 = vmatpush1.msra.mxu0 0.0
        %1246 = vmatprep.subr.mxu0 0.0
        %1247 = vmatpush1.msra.mxu0 0.0
        %1248 = vmatprep.subr.mxu0 0.0
        %1249 = vmatpush1.msra.mxu0 0.0
        %1250 = vmatprep.subr.mxu0 0.0
        %1251 = vmatpush1.msra.mxu0 0.0
        %1252 = vmatprep.subr.mxu0 0.0
        %1253 = vmatpush1.msra.mxu0 0.0
        %1254 = vmatprep.subr.mxu0 0.0
        %1255 = vmatpush1.msra.mxu0 0.0
        %1256 = vmatprep.subr.mxu0 0.0
        %1257 = vmatpush1.msra.mxu0 0.0
        %1258 = vmatprep.subr.mxu0 0.0
        %1259 = vmatpush1.msra.mxu0 0.0
        %1260 = vmatprep.subr.mxu0 0.0
        %1261 = vmatpush1.msra.mxu0 0.0
        %1262 = vmatprep.subr.mxu0 0.0
        %1263 = vmatpush1.msra.mxu0 0.0
        %1264 = vmatprep.subr.mxu0 0.0
        %1265 = vmatpush1.msra.mxu0 0.0
        %1266 = vmatprep.subr.mxu0 0.0
        %1267 = vmatpush1.msra.mxu0 0.0
        %1268 = vmatprep.subr.mxu0 0.0
        %1269 = vmatpush1.msra.mxu0 0.0
        %1270 = vmatprep.subr.mxu0 0.0
        %1271 = vmatpush1.msra.mxu0 0.0
        %1272 = vmatprep.subr.mxu0 0.0
        %1273 = vmatpush1.msra.mxu0 0.0
        %1274 = vmatprep.subr.mxu0 0.0
        %1275 = vmatpush1.msra.mxu0 0.0
        %1276 = vmatprep.subr.mxu0 0.0
        %1277 = vmatpush1.msra.mxu0 0.0
        %1278 = vmatprep.subr.mxu0 0.0
        %1279 = vmatpush1.msra.mxu0 0.0
        %1280 = vmatprep.mubr.f32.mxu0 0.0
        %1281 = vmatmul.mubr.f32.gmra.mrb[0].mxu0 %v982
        %v1282 = vpop.f32.mrb[0].mxu0
        %v1283 = vadd.f32 %v1208, %v1282
        %v1284 = vpop.f32.mrb[0].mxu0
        %1285 = vmatprep.mubr.f32.mxu0 0.0
        %1286 = vmatmul.mubr.f32.gmra.mrb[0].mxu0 %v985
        %v1287 = vpop.f32.mrb[0].mxu0
        %v1288 = vadd.f32 %v1213, %v1287
        %v1289 = vpop.f32.mrb[0].mxu0
        %1290 = vdwg.mxu0
        %v1291 = vld [vmem:[%s238] sm:$0xff]
        %v1292 = vld [vmem:[%s238 + $0x8] sm:$0xff]
        %v1293 = vld [vmem:[%s238 + $0x10] sm:$0xff]
        %v1294 = vlaneseq
        %v1295 = vand.u32 %v1294, 127
        %v1296 = vadd.s32 %v1295, 128
        %vm1297 = vcmp.eq.s32.totalorder %v1291, %v1295
        %vm1298 = vcmp.eq.s32.totalorder %v1292, %v1296
        %v1299 = vsel %vm1297, %v1137, 0.0
        %v1300 = vsel %vm1298, %v1139, 0.0
        %1301 = vrot.lane.b32.xlu0 %v1295, 1
        %v1302 = vpop.permute.xlu0 %1301
        %1303 = vrot.lane.b32.xlu0 %v1296, 1
        %v1304 = vpop.permute.xlu0 %1303
        %vm1305 = vcmask 7168
        %v1306 = vsel %vm1305, %v1302, %v1304
        %vm1307 = vcmp.eq.s32.totalorder %v1291, %v1302
        %vm1308 = vcmp.eq.s32.totalorder %v1292, %v1306
        %vm1309 = vcmp.eq.s32.totalorder %v1293, %v1304
        %1312 = vrot.lane.b32.xlu0 %v1299, 1
        %v1313 = vpop.permute.xlu0 %1312
        %1314 = vrot.lane.b32.xlu0 %v1300, 1
        %v1315 = vpop.permute.xlu0 %1314
        %v1316 = vsel %vm1305, %v1313, %v1315
        %v1320 = vsel %vm1307, %v1137, %v1313
        %v1321 = vsel %vm1308, %v1139, %v1316
        %v1322 = vsel %vm1309, %v1288, %v1315
        %1323 = vrot.lane.b32.xlu0 %v1295, 2
        %v1324 = vpop.permute.xlu0 %1323
        %1325 = vrot.lane.b32.xlu0 %v1296, 2
        %v1326 = vpop.permute.xlu0 %1325
        %v1327 = vsel %vm282, %v1324, %v1326
        %vm1328 = vcmp.eq.s32.totalorder %v1291, %v1324
        %vm1329 = vcmp.eq.s32.totalorder %v1292, %v1327
        %vm1330 = vcmp.eq.s32.totalorder %v1293, %v1326
        %1334 = vrot.lane.b32.xlu0 %v1320, 1
        %v1335 = vpop.permute.xlu0 %1334
        %1336 = vrot.lane.b32.xlu0 %v1321, 1
        %v1337 = vpop.permute.xlu0 %1336
        %1338 = vrot.lane.b32.xlu0 %v1322, 1
        %v1339 = vpop.permute.xlu0 %1338
        %v1340 = vsel %vm1305, %v1335, %v1337
        %v1341 = vsel %vm1305, %v1337, %v1339
        %v1345 = vsel %vm1328, %v1137, %v1335
        %v1346 = vsel %vm1329, %v1139, %v1340
        %v1347 = vsel %vm1330, %v1288, %v1341
        %1351 = vrot.lane.b32.xlu0 %v1345, 127
        %v1352 = vpop.permute.xlu0 %1351
        %1353 = vrot.lane.b32.xlu0 %v1346, 127
        %v1354 = vpop.permute.xlu0 %1353
        %1355 = vrot.lane.b32.xlu0 %v1347, 127
        %v1356 = vpop.permute.xlu0 %1355
        %v1357 = vsel %vm293, %v1352, %v1354
        %v1358 = vsel %vm293, %v1354, %v1356
        %v1362 = vadd.f32 %v1131, %v1357
        %v1363 = vadd.f32 %v1133, %v1358
        %v1364 = vadd.f32 %v1283, %v1356
        %1368 = vrot.lane.b32.xlu0 %v1362, 127
        %v1369 = vpop.permute.xlu0 %1368
        %1370 = vrot.lane.b32.xlu0 %v1363, 127
        %v1371 = vpop.permute.xlu0 %1370
        %1372 = vrot.lane.b32.xlu0 %v1364, 127
        %v1373 = vpop.permute.xlu0 %1372
        %v1374 = vsel %vm293, %v1369, %v1371
        %v1375 = vsel %vm293, %v1371, %v1373
        %1378 = vst [vmem:[%s269] sm:$0xff] %v1374
        %1379 = vst [vmem:[%s269 + $0x8] sm:$0xff] %v1375
        %v1380 = vmul.f32 %v1362, %v1362
        %v1381 = vmul.f32 %v1363, %v1363
        %v1382 = vadd.f32 %v1362, %v1363
        %v1383 = vadd.f32 %v1363, %v1364
        %v1384 = vmul.f32 %v1364, %v1364
        %v1385 = vadd.f32 %v1380, %v1381
        %v1386 = vadd.f32 %v1381, %v1384
        %1389 = vrot.lane.b32.xlu0 %v1382, 127
        %v1390 = vpop.permute.xlu0 %1389
        %1391 = vrot.lane.b32.xlu0 %v1383, 127
        %v1392 = vpop.permute.xlu0 %1391
        %v1393 = vsel %vm293, %v1390, %v1392
        %1395 = vst [vmem:[%s276] sm:$0xff] %v1393
        %1398 = vrot.lane.b32.xlu0 %v1385, 127
        %v1399 = vpop.permute.xlu0 %1398
        %1400 = vrot.lane.b32.xlu0 %v1386, 127
        %v1401 = vpop.permute.xlu0 %1400
        %v1402 = vsel %vm293, %v1399, %v1401
        %s1404 = scalar_lea.vmem %s276, 8 [#allocation10]
        %1405 = vst [vmem:[%s1404] sm:$0xff] %v1402
        %s1406 = sand.u32 %s109, 1
        %s1407 = scalar_lea.sflag [#allocation5], %s1406
        %s1408 = sand.u32 %s109, 1
        %s1409 = smul.addr %s1408, 16
        %s1410 = scalar_lea.vmem [#allocation9], %s1409
        %s1411 = sand.u32 %s135, 1
        %s1412 = scalar_lea.sflag [#allocation11], %s1411
        %s1413 = sand.u32 %s135, 1
        %s1414 = smul.addr %s1413, 16
        %s1415 = scalar_lea.vmem [#allocation10], %s1414
        // Predicated region
        $region45: #{tpu_custom_call.1} parent=31 // pred_check
          %p1416 = pneg %p119
        $region46: #{tpu_custom_call.1} parent=31 // pred_check_branch
          %1418 = sbr.rel (%p1416) target = $region48
        $region47: #{tpu_custom_call.1} parent=31 // pred_region
          %s1420 = ssub.s32 256, 256
          %1421 = vsyncadd %s1407, %s1420
          %s1422 = smul.addr %s28, 2
          %s1423 = smul.addr %s1422, 128
          %s1424 = scalar_lea.hbm %s3, %s1423
          %s1426 = sshll.u32 %s1410, 4
          %s1427 = int_to_ptr.vmem [resolvable:$true] %s1426
          %1429 = dma.vmem_to_hbm [thread:$0]  %s1427, 256, %s1424, %s1407
        $region48: #{tpu_custom_call.1} parent=31 // pred_fallthru
          _
        // Predicated region
        $region49: #{tpu_custom_call.1} parent=31 // pred_check
          %p1430 = pneg %p145
        $region50: #{tpu_custom_call.1} parent=31 // pred_check_branch
          %1432 = sbr.rel (%p1430) target = $region52
        $region51: #{tpu_custom_call.1} parent=31 // pred_region
          %s1434 = ssub.s32 256, 256
          %1435 = vsyncadd %s1412, %s1434
          %s1436 = smul.addr %s28, 2
          %s1437 = smul.addr %s1436, 128
          %s1438 = scalar_lea.hbm %s4, %s1437
          %s1439 = sshll.u32 %s1415, 4
          %s1440 = int_to_ptr.vmem [resolvable:$true] %s1439
          %1445 = dma.vmem_to_hbm [thread:$0]  %s1440, 256, %s1438, %s1412, 128, 128, 8
        $region52: #{tpu_custom_call.1} parent=31 // pred_fallthru
          _
      $region32: #{tpu_custom_call.1} parent=5 // pred_fallthru
        _
      %p1446 = scmp.le.s32.totalorder 2, %s23
      // Predicated region
      $region53: #{tpu_custom_call.1} parent=5 // pred_check
        %p1447 = pneg %p1446
      $region54: #{tpu_custom_call.1} parent=5 // pred_check_branch
        %1449 = sbr.rel (%p1447) target = $region56
      $region55: #{tpu_custom_call.1} parent=5 // pred_region
        %s1450 = ssub.s32 %s23, 2
        // Predicated region
        $region57: #{tpu_custom_call.1} parent=55 // pred_check
          %p1451 = pneg %p125
        $region58: #{tpu_custom_call.1} parent=55 // pred_check_branch
          %1453 = sbr.rel (%p1451) target = $region60
        $region59: #{tpu_custom_call.1} parent=55 // pred_region
          %s1454 = sand.u32 %s110, 1
          %s1455 = scalar_lea.sflag [#allocation5], %s1454
          %s1456 = sand.u32 %s110, 1
          %s1457 = smul.addr %s1456, 16
          %s1458 = scalar_lea.vmem [#allocation9], %s1457
          %1459 = dma.done %s1455, 256
        $region60: #{tpu_custom_call.1} parent=55 // pred_fallthru
          _
        // Predicated region
        $region61: #{tpu_custom_call.1} parent=55 // pred_check
          %p1460 = pneg %p151
        $region62: #{tpu_custom_call.1} parent=55 // pred_check_branch
          %1462 = sbr.rel (%p1460) target = $region64
        $region63: #{tpu_custom_call.1} parent=55 // pred_region
          %s1463 = sand.u32 %s136, 1
          %s1464 = scalar_lea.sflag [#allocation11], %s1463
          %s1465 = sand.u32 %s136, 1
          %s1466 = smul.addr %s1465, 16
          %s1467 = scalar_lea.vmem [#allocation10], %s1466
          %1468 = dma.done %s1464, 256
        $region64: #{tpu_custom_call.1} parent=55 // pred_fallthru
          _
      $region56: #{tpu_custom_call.1} parent=5 // pred_fallthru
        _
    $region6: #{tpu_custom_call.1} parent=1 // loop_footer
      %s27 = sadd.s32 1, %s23
    $region7: #{tpu_custom_call.1} parent=1 // loop_footer_branch
      %22 = sbr.rel target = $region3
    $region8: #{tpu_custom_call.1} parent=1 // loop_exit
      _
    %1469 = vsyncpa [#allocation4], 1
    %s1470 = scalar_lea.sflag [#allocation4], 1
    %1471 = vsyncpa %s1470, 1
    %1472 = vsyncpa [#allocation7], 1
    %s1473 = scalar_lea.sflag [#allocation7], 1
    %1474 = vsyncpa %s1473, 1
    %1475 = vsyncpa [#allocation5], 1
    %s1476 = scalar_lea.sflag [#allocation5], 1
    %1477 = vsyncpa %s1476, 1
    %1478 = vsyncpa [#allocation11], 1
    %s1479 = scalar_lea.sflag [#allocation11], 1
    %1480 = vsyncpa %s1479, 1

</llo_original>
